<compile_context>
chip_gen: v6e
topology: v6e:2x2x1
jax: 0.10.0
libtpu: 0.0.40
codegen_flags: <defaults>
</compile_context>

<pallas_src>
import functools

import jax
import jax.numpy as jnp
from jax.experimental import pallas as pl
from jax.experimental.pallas import tpu as pltpu


def projector_kernel(x_ref, w1_ref, b1_ref, w2_ref, b2_ref, o_ref):
    # First linear on the MXU: bf16 x bf16 -> f32 accumulation. [tm, D_in] @ [D_in, D_h]
    h = jnp.dot(x_ref[...], w1_ref[...], preferred_element_type=jnp.float32)
    # Bias-add + ReLU in f32 on the VPU.
    h = jnp.maximum(h + b1_ref[...], 0.0)
    # Dropout(p) in eval mode == identity (no-op).
    # Second linear: [tm, D_h] @ [D_h, D_out]; downcast the ReLU output to bf16 for
    # the MXU, keep f32 accumulation.
    y = jnp.dot(h.astype(w2_ref.dtype), w2_ref[...], preferred_element_type=jnp.float32)
    y = y + b2_ref[...]
    o_ref[...] = y.astype(o_ref.dtype)


def _round_up(n, m):
    return ((n + m - 1) // m) * m


@functools.partial(jax.jit, static_argnames=("tm",))
def embedding_projector(x, w1, b1, w2, b2, *, tm=256):
    """Fused Linear -> ReLU -> Dropout(eval) -> Linear.

    x : [B, D_in]     (output dtype matches x.dtype)
    w1: [D_in, D_h]   (pre-transposed vs. torch Linear.weight)
    b1: [D_h] or [1, D_h]
    w2: [D_h, D_out]
    b2: [D_out] or [1, D_out]
    """
    B, d_in = x.shape
    d_h = w1.shape[1]
    d_out = w2.shape[1]
    out_dtype = x.dtype

    b1 = b1.reshape(1, d_h).astype(jnp.float32)
    b2 = b2.reshape(1, d_out).astype(jnp.float32)

    # Batch tile: big enough to keep the MXU busy / amortize per-step overhead, but
    # keep >= 2 grid blocks when the batch allows (megacore). Sublane granularity = 8.
    tm = max(8, min(tm, _round_up(max(B // 2, 1), 8)))
    b_pad = _round_up(B, tm)
    if b_pad != B:
        x = jnp.pad(x, ((0, b_pad - B), (0, 0)))
    grid = (b_pad // tm,)

    # bf16 matmul operands; accumulation stays f32 inside the kernel.
    x_lo = x.astype(jnp.bfloat16)
    w1_lo = w1.astype(jnp.bfloat16)
    w2_lo = w2.astype(jnp.bfloat16)

    flops = 2 * b_pad * (d_in * d_h + d_h * d_out)
    bytes_accessed = (
        b_pad * d_in * 2            # x (bf16)
        + d_in * d_h * 2            # W1 (bf16)
        + d_h * d_out * 2           # W2 (bf16)
        + (d_h + d_out) * 4         # biases (f32)
        + b_pad * d_out * jnp.dtype(out_dtype).itemsize  # output
    )

    out = pl.pallas_call(
        projector_kernel,
        out_shape=jax.ShapeDtypeStruct((b_pad, d_out), out_dtype),
        grid_spec=pltpu.PrefetchScalarGridSpec(
            num_scalar_prefetch=0,
            grid=grid,
            in_specs=[
                pl.BlockSpec((tm, d_in), lambda i: (i, 0)),    # x tile (pipelined over batch)
                pl.BlockSpec((d_in, d_h), lambda i: (0, 0)),   # W1 (VMEM-resident)
                pl.BlockSpec((1, d_h), lambda i: (0, 0)),      # b1 (resident)
                pl.BlockSpec((d_h, d_out), lambda i: (0, 0)),  # W2 (resident)
                pl.BlockSpec((1, d_out), lambda i: (0, 0)),    # b2 (resident)
            ],
            out_specs=pl.BlockSpec((tm, d_out), lambda i: (i, 0)),
        ),
        compiler_params=pltpu.CompilerParams(
            dimension_semantics=("parallel",),
            vmem_limit_bytes=48 * 1024 * 1024,
        ),
        cost_estimate=pl.CostEstimate(
            flops=flops, transcendentals=0, bytes_accessed=bytes_accessed
        ),
    )(x_lo, w1_lo, b1, w2_lo, b2)

    return out[:B] if b_pad != B else out


def _ref(x, w1, b1, w2, b2):
    h = jnp.maximum(x @ w1 + b1, 0.0)
    return h @ w2 + b2


if __name__ == "__main__":
    # Module default dims (input_dim=768, hidden=512, out=256); B=200 exercises the
    # padded / multi-block grid path.
    B, D_IN, D_H, D_OUT = 200, 768, 512, 256

    key = jax.random.PRNGKey(0)
    kx, kw1, kb1, kw2, kb2 = jax.random.split(key, 5)

    x = jax.random.normal(kx, (B, D_IN), dtype=jnp.float32)

    # Deterministic PyTorch-style init: uniform(-1/sqrt(fan_in), 1/sqrt(fan_in)).
    lim1 = 1.0 / (D_IN ** 0.5)
    lim2 = 1.0 / (D_H ** 0.5)
    w1 = jax.random.uniform(kw1, (D_IN, D_H), minval=-lim1, maxval=lim1, dtype=jnp.float32)
    b1 = jax.random.uniform(kb1, (D_H,), minval=-lim1, maxval=lim1, dtype=jnp.float32)
    w2 = jax.random.uniform(kw2, (D_H, D_OUT), minval=-lim2, maxval=lim2, dtype=jnp.float32)
    b2 = jax.random.uniform(kb2, (D_OUT,), minval=-lim2, maxval=lim2, dtype=jnp.float32)

    out = embedding_projector(x, w1, b1, w2, b2)
    out = jax.block_until_ready(out)

    ref = _ref(x, w1, b1, w2, b2)
    assert out.shape == (B, D_OUT)
    # bf16 matmul operands with f32 accumulation -> relaxed tolerance vs. f32 reference.
    assert jnp.allclose(out, ref, atol=2e-2, rtol=2e-2), "mismatch vs JAX reference"

    print("KERNEL_OK")
</pallas_src>

<mosaic_0001>
module attributes {stable_mosaic.version = 11 : i64} {
  func.func @projector_kernel(%arg0: i32, %arg1: memref<104x768xbf16, #tpu.memory_space<vmem>>, %arg2: memref<768x512xbf16, #tpu.memory_space<vmem>>, %arg3: memref<1x512xf32, #tpu.memory_space<vmem>>, %arg4: memref<512x256xbf16, #tpu.memory_space<vmem>>, %arg5: memref<1x256xf32, #tpu.memory_space<vmem>>, %arg6: memref<104x256xf32, #tpu.memory_space<vmem>>) attributes {dimension_semantics = [#tpu.dimension_semantics<parallel>], iteration_bounds = array<i64: 2>, scalar_prefetch = 0 : i64, scratch_operands = 0 : i64, tpu.core_type = #tpu.core_type<tc>, window_params = [{transform_indices = @transform_0, window_bounds = array<i64: 104, 768>}, {pipeline_mode = #tpu.pipeline_mode<synchronous>, transform_indices = @transform_1, window_bounds = array<i64: 768, 512>}, {pipeline_mode = #tpu.pipeline_mode<synchronous>, transform_indices = @transform_2, window_bounds = array<i64: 1, 512>}, {pipeline_mode = #tpu.pipeline_mode<synchronous>, transform_indices = @transform_3, window_bounds = array<i64: 512, 256>}, {pipeline_mode = #tpu.pipeline_mode<synchronous>, transform_indices = @transform_4, window_bounds = array<i64: 1, 256>}, {transform_indices = @transform_5, window_bounds = array<i64: 104, 256>}]} {
    %c0 = arith.constant 0 : index
    %c0_0 = arith.constant 0 : index
    %0 = vector.load %arg1[%c0, %c0_0] : memref<104x768xbf16, #tpu.memory_space<vmem>>, vector<104x768xbf16>
    %c0_1 = arith.constant 0 : index
    %c0_2 = arith.constant 0 : index
    %1 = vector.load %arg2[%c0_1, %c0_2] : memref<768x512xbf16, #tpu.memory_space<vmem>>, vector<768x512xbf16>
    %cst = arith.constant dense<0.000000e+00> : vector<104x512xf32>
    %2 = tpu.matmul %0, %1, %cst {dimension_numbers = #tpu.dot_dimension_numbers<[1], [0], [0], [1], [0, 0, 1, 1], [], []>} : vector<104x768xbf16>, vector<768x512xbf16>, vector<104x512xf32> -> vector<104x512xf32>
    %c0_3 = arith.constant 0 : index
    %c0_4 = arith.constant 0 : index
    %3 = vector.load %arg3[%c0_3, %c0_4] : memref<1x512xf32, #tpu.memory_space<vmem>>, vector<1x512xf32>
    %4 = vector.broadcast %3 : vector<1x512xf32> to vector<104x512xf32>
    %5 = arith.addf %2, %4 : vector<104x512xf32>
    %cst_5 = arith.constant 0.000000e+00 : f32
    %6 = vector.broadcast %cst_5 : f32 to vector<104x512xf32>
    %7 = arith.maximumf %5, %6 : vector<104x512xf32>
    %8 = arith.truncf %7 : vector<104x512xf32> to vector<104x512xbf16>
    %c0_6 = arith.constant 0 : index
    %c0_7 = arith.constant 0 : index
    %9 = vector.load %arg4[%c0_6, %c0_7] : memref<512x256xbf16, #tpu.memory_space<vmem>>, vector<512x256xbf16>
    %cst_8 = arith.constant dense<0.000000e+00> : vector<104x256xf32>
    %10 = tpu.matmul %8, %9, %cst_8 {dimension_numbers = #tpu.dot_dimension_numbers<[1], [0], [0], [1], [0, 0, 1, 1], [], []>} : vector<104x512xbf16>, vector<512x256xbf16>, vector<104x256xf32> -> vector<104x256xf32>
    %c0_9 = arith.constant 0 : index
    %c0_10 = arith.constant 0 : index
    %11 = vector.load %arg5[%c0_9, %c0_10] : memref<1x256xf32, #tpu.memory_space<vmem>>, vector<1x256xf32>
    %12 = vector.broadcast %11 : vector<1x256xf32> to vector<104x256xf32>
    %13 = arith.addf %10, %12 : vector<104x256xf32>
    %c0_11 = arith.constant 0 : index
    %c0_12 = arith.constant 0 : index
    %14 = vector.load %arg6[%c0_11, %c0_12] : memref<104x256xf32, #tpu.memory_space<vmem>>, vector<104x256xf32>
    tpu.vector_store %arg6[%c0_11, %c0_12], %13 {strides = array<i32>} : memref<104x256xf32, #tpu.memory_space<vmem>>, vector<104x256xf32>,
    return
  }
  func.func @transform_0(%arg0: i32) -> (i32, i32) {
    %c0_i32 = arith.constant 0 : i32
    %c0_i32_0 = arith.constant 0 : i32
    return %arg0, %c0_i32 : i32, i32
  }
  func.func @transform_1(%arg0: i32) -> (i32, i32) {
    %c0_i32 = arith.constant 0 : i32
    %c0_i32_0 = arith.constant 0 : i32
    %c0_i32_1 = arith.constant 0 : i32
    return %c0_i32, %c0_i32_0 : i32, i32
  }
  func.func @transform_2(%arg0: i32) -> (i32, i32) {
    %c0_i32 = arith.constant 0 : i32
    %c0_i32_0 = arith.constant 0 : i32
    %c0_i32_1 = arith.constant 0 : i32
    return %c0_i32, %c0_i32_0 : i32, i32
  }
  func.func @transform_3(%arg0: i32) -> (i32, i32) {
    %c0_i32 = arith.constant 0 : i32
    %c0_i32_0 = arith.constant 0 : i32
    %c0_i32_1 = arith.constant 0 : i32
    return %c0_i32, %c0_i32_0 : i32, i32
  }
  func.func @transform_4(%arg0: i32) -> (i32, i32) {
    %c0_i32 = arith.constant 0 : i32
    %c0_i32_0 = arith.constant 0 : i32
    %c0_i32_1 = arith.constant 0 : i32
    return %c0_i32, %c0_i32_0 : i32, i32
  }
  func.func @transform_5(%arg0: i32) -> (i32, i32) {
    %c0_i32 = arith.constant 0 : i32
    %c0_i32_0 = arith.constant 0 : i32
    return %arg0, %c0_i32 : i32, i32
  }
}

</mosaic_0001>

<llo_original>
// kernel: embedding_projector.1
$region0: #{embedding_projector.1}
  #allocation0 [shape = 'u32[]', space=smem, size = 0x4, offset = 0x4, fixed_abs, tag = 'smem constant byte address 0x4 - core index']
  #allocation1 [shape = 'u32[144,128]{1,0:T(1,128)}', space=vmem, size = 0x12000, scoped, tag = 'internal scratch']
  %s0 = inlined_call_operand.vmem [shape: bf16[208,768], index: 0, kind: input, shape index: {}]
  %s1 = inlined_call_operand.vmem [shape: bf16[768,512], index: 1, kind: input, shape index: {}]
  %s2 = inlined_call_operand.vmem [shape: f32[1,512], index: 2, kind: input, shape index: {}]
  %s3 = inlined_call_operand.vmem [shape: bf16[512,256], index: 3, kind: input, shape index: {}]
  %s4 = inlined_call_operand.vmem [shape: f32[1,256], index: 4, kind: input, shape index: {}]
  %s5 = inlined_call_operand.vmem [shape: f32[208,256], index: 5, kind: output, shape index: {}]
  %s6 = sld [smem:[#allocation0]]
  $region53: #{embedding_projector.1} parent=0
    _
  %s8 = ssub.s32 1, %s6
  %s9 = scalar_select 0, %s8, %s6
  loop: start=0, step=1, limit=4
  $region2: #{embedding_projector.1} parent=0 // loop_pre_header
    _
  $region3: #{embedding_projector.1} parent=0 // loop_header
    %s11 = sphi 0, %s15
    %p12 = scmp.ge.s32.totalorder %s11, 4
    %s21 = sphi 0, %s23
    %s24 = sphi 0, %s21
    %s25 = sphi 0, %s24
    %s41 = sphi 0, %s25
    %s45 = sphi 0, %s45
    %s47 = sphi 0, %s45
    %s48 = sphi 0, %s47
    %s62 = sphi 0, %s48
    %s66 = sphi 0, %s66
    %s68 = sphi 0, %s66
    %s69 = sphi 0, %s68
    %s83 = sphi 0, %s69
    %s87 = sphi 0, %s87
    %s89 = sphi 0, %s87
    %s90 = sphi 0, %s89
    %s104 = sphi 0, %s90
    %s108 = sphi 0, %s108
    %s110 = sphi 0, %s108
    %s111 = sphi 0, %s110
    %s125 = sphi 0, %s111
    %s131 = sphi 0, %s133
    %s134 = sphi 0, %s131
    %s135 = sphi 0, %s134
    %s151 = sphi 0, %s135
  $region4: #{embedding_projector.1} parent=0 // loop_header_branch
    %14 = sbr.rel (%p12) target = $region8
  $region5: #{embedding_projector.1} parent=0 // loop_body
    %s16 = ssub.s32 %s11, 1
    %s17 = ssub.s32 %s11, 2
    %s18 = sadd.s32 %s11, 1
    %s19 = ssub.s32 %s11, %s18
    %p20 = scmp.eq.s32.totalorder %s19, 0
    %s22 = sadd.s32 %s21, 1
    %s23 = scalar_select %p20, %s21, %s22
    %p26 = pneg %p20
    %p27 = scmp.eq.s32.totalorder %s11, 1
    %p28 = por %p26, %p27
    %p29 = scmp.ne.s32.totalorder %s21, %s24
    %p30 = scmp.eq.s32.totalorder %s11, 0
    %p31 = por %p29, %p30
    %p32 = scmp.ne.s32.totalorder %s21, %s24
    %p33 = scmp.eq.s32.totalorder %s16, 1
    %p34 = por %p32, %p33
    %p35 = scmp.ne.s32.totalorder %s24, %s25
    %p36 = scmp.eq.s32.totalorder %s16, 0
    %p37 = por %p35, %p36
    %p38 = scmp.ne.s32.totalorder %s24, %s25
    %p39 = scmp.eq.s32.totalorder %s17, 1
    %p40 = por %p38, %p39
    %p42 = scmp.ne.s32.totalorder %s25, %s41
    %p43 = scmp.eq.s32.totalorder %s17, 0
    %p44 = por %p42, %p43
    %s46 = sadd.s32 %s45, 1
    %p49 = scmp.eq.s32.totalorder %s11, 1
    %p50 = scmp.ne.s32.totalorder %s45, %s47
    %p51 = scmp.eq.s32.totalorder %s11, 0
    %p52 = por %p50, %p51
    %p53 = scmp.ne.s32.totalorder %s45, %s47
    %p54 = scmp.eq.s32.totalorder %s16, 1
    %p55 = por %p53, %p54
    %p56 = scmp.ne.s32.totalorder %s47, %s48
    %p57 = scmp.eq.s32.totalorder %s16, 0
    %p58 = por %p56, %p57
    %p59 = scmp.ne.s32.totalorder %s47, %s48
    %p60 = scmp.eq.s32.totalorder %s17, 1
    %p61 = por %p59, %p60
    %p63 = scmp.ne.s32.totalorder %s48, %s62
    %p64 = scmp.eq.s32.totalorder %s17, 0
    %p65 = por %p63, %p64
    %s67 = sadd.s32 %s66, 1
    %p70 = scmp.eq.s32.totalorder %s11, 1
    %p71 = scmp.ne.s32.totalorder %s66, %s68
    %p72 = scmp.eq.s32.totalorder %s11, 0
    %p73 = por %p71, %p72
    %p74 = scmp.ne.s32.totalorder %s66, %s68
    %p75 = scmp.eq.s32.totalorder %s16, 1
    %p76 = por %p74, %p75
    %p77 = scmp.ne.s32.totalorder %s68, %s69
    %p78 = scmp.eq.s32.totalorder %s16, 0
    %p79 = por %p77, %p78
    %p80 = scmp.ne.s32.totalorder %s68, %s69
    %p81 = scmp.eq.s32.totalorder %s17, 1
    %p82 = por %p80, %p81
    %p84 = scmp.ne.s32.totalorder %s69, %s83
    %p85 = scmp.eq.s32.totalorder %s17, 0
    %p86 = por %p84, %p85
    %s88 = sadd.s32 %s87, 1
    %p91 = scmp.eq.s32.totalorder %s11, 1
    %p92 = scmp.ne.s32.totalorder %s87, %s89
    %p93 = scmp.eq.s32.totalorder %s11, 0
    %p94 = por %p92, %p93
    %p95 = scmp.ne.s32.totalorder %s87, %s89
    %p96 = scmp.eq.s32.totalorder %s16, 1
    %p97 = por %p95, %p96
    %p98 = scmp.ne.s32.totalorder %s89, %s90
    %p99 = scmp.eq.s32.totalorder %s16, 0
    %p100 = por %p98, %p99
    %p101 = scmp.ne.s32.totalorder %s89, %s90
    %p102 = scmp.eq.s32.totalorder %s17, 1
    %p103 = por %p101, %p102
    %p105 = scmp.ne.s32.totalorder %s90, %s104
    %p106 = scmp.eq.s32.totalorder %s17, 0
    %p107 = por %p105, %p106
    %s109 = sadd.s32 %s108, 1
    %p112 = scmp.eq.s32.totalorder %s11, 1
    %p113 = scmp.ne.s32.totalorder %s108, %s110
    %p114 = scmp.eq.s32.totalorder %s11, 0
    %p115 = por %p113, %p114
    %p116 = scmp.ne.s32.totalorder %s108, %s110
    %p117 = scmp.eq.s32.totalorder %s16, 1
    %p118 = por %p116, %p117
    %p119 = scmp.ne.s32.totalorder %s110, %s111
    %p120 = scmp.eq.s32.totalorder %s16, 0
    %p121 = por %p119, %p120
    %p122 = scmp.ne.s32.totalorder %s110, %s111
    %p123 = scmp.eq.s32.totalorder %s17, 1
    %p124 = por %p122, %p123
    %p126 = scmp.ne.s32.totalorder %s111, %s125
    %p127 = scmp.eq.s32.totalorder %s17, 0
    %p128 = por %p126, %p127
    %s129 = ssub.s32 %s11, %s18
    %p130 = scmp.eq.s32.totalorder %s129, 0
    %s132 = sadd.s32 %s131, 1
    %s133 = scalar_select %p130, %s131, %s132
    %p136 = pneg %p130
    %p137 = scmp.eq.s32.totalorder %s11, 1
    %p138 = por %p136, %p137
    %p139 = scmp.ne.s32.totalorder %s131, %s134
    %p140 = scmp.eq.s32.totalorder %s11, 0
    %p141 = por %p139, %p140
    %p142 = scmp.ne.s32.totalorder %s131, %s134
    %p143 = scmp.eq.s32.totalorder %s16, 1
    %p144 = por %p142, %p143
    %p145 = scmp.ne.s32.totalorder %s134, %s135
    %p146 = scmp.eq.s32.totalorder %s16, 0
    %p147 = por %p145, %p146
    %p148 = scmp.ne.s32.totalorder %s134, %s135
    %p149 = scmp.eq.s32.totalorder %s17, 1
    %p150 = por %p148, %p149
    %p152 = scmp.ne.s32.totalorder %s135, %s151
    %p153 = scmp.eq.s32.totalorder %s17, 0
    %p154 = por %p152, %p153
    %p155 = scmp.le.s32.totalorder 1, %s11
    %p156 = scmp.lt.s32.totalorder %s11, 3
    %p157 = pnand %p155, %p156
    %p158 = pneg %p157
    // Predicated region
    $region9: #{embedding_projector.1} parent=5 // pred_check
      _
    $region10: #{embedding_projector.1} parent=5 // pred_check_branch
      %160 = sbr.rel (%p157) target = $region12
    $region11: #{embedding_projector.1} parent=5 // pred_region
      %s161 = ssub.s32 %s11, 1
      // Predicated region
      $region13: #{embedding_projector.1} parent=11 // pred_check
        %p162 = pneg %p58
      $region14: #{embedding_projector.1} parent=11 // pred_check_branch
        %164 = sbr.rel (%p162) target = $region16
      $region15: #{embedding_projector.1} parent=11 // pred_region
        _
      $region16: #{embedding_projector.1} parent=11 // pred_fallthru
        _
      // Predicated region
      $region17: #{embedding_projector.1} parent=11 // pred_check
        %p165 = pneg %p79
      $region18: #{embedding_projector.1} parent=11 // pred_check_branch
        %167 = sbr.rel (%p165) target = $region20
      $region19: #{embedding_projector.1} parent=11 // pred_region
        _
      $region20: #{embedding_projector.1} parent=11 // pred_fallthru
        _
      // Predicated region
      $region21: #{embedding_projector.1} parent=11 // pred_check
        %p168 = pneg %p100
      $region22: #{embedding_projector.1} parent=11 // pred_check_branch
        %170 = sbr.rel (%p168) target = $region24
      $region23: #{embedding_projector.1} parent=11 // pred_region
        _
      $region24: #{embedding_projector.1} parent=11 // pred_fallthru
        _
      // Predicated region
      $region25: #{embedding_projector.1} parent=11 // pred_check
        %p171 = pneg %p121
      $region26: #{embedding_projector.1} parent=11 // pred_check_branch
        %173 = sbr.rel (%p171) target = $region28
      $region27: #{embedding_projector.1} parent=11 // pred_region
        _
      $region28: #{embedding_projector.1} parent=11 // pred_fallthru
        _
    $region12: #{embedding_projector.1} parent=5 // pred_fallthru
      _
    %p174 = scmp.lt.s32.totalorder %s11, 2
    // Predicated region
    $region29: #{embedding_projector.1} parent=5 // pred_check
      %p175 = pneg %p174
    $region30: #{embedding_projector.1} parent=5 // pred_check_branch
      %177 = sbr.rel (%p175) target = $region32
    $region31: #{embedding_projector.1} parent=5 // pred_region
      // Predicated region
      $region33: #{embedding_projector.1} parent=31 // pred_check
        %p178 = pneg %p31
      $region34: #{embedding_projector.1} parent=31 // pred_check_branch
        %180 = sbr.rel (%p178) target = $region36
      $region35: #{embedding_projector.1} parent=31 // pred_region
        %s181 = smul.u32 13, %s11
        %p182 = scmp.lt.s32.totalorder %s181, 25
        %s183 = scalar_select %p182, %s181, 25
        %s184 = smul.addr %s183, 6
        %s185 = smul.addr %s184, 4
        %s186 = scalar_lea.vmem %s0, %s185
        %s187 = smul.u32 13, %s11
      $region36: #{embedding_projector.1} parent=31 // pred_fallthru
        _
    $region32: #{embedding_projector.1} parent=5 // pred_fallthru
      _
    %p188 = scmp.le.s32.totalorder 1, %s11
    %p189 = scmp.lt.s32.totalorder %s11, 3
    %p190 = pnand %p188, %p189
    %p191 = pneg %p190
    // Predicated region
    $region37: #{embedding_projector.1} parent=5 // pred_check
      _
    $region38: #{embedding_projector.1} parent=5 // pred_check_branch
      %193 = sbr.rel (%p190) target = $region40
    $region39: #{embedding_projector.1} parent=5 // pred_region
      %s194 = ssub.s32 %s11, 1
      %s195 = smul.u32 13, %s16
      %p196 = scmp.lt.s32.totalorder %s195, 25
      %s197 = scalar_select %p196, %s195, 25
      %s198 = smul.addr %s197, 6
      %s199 = smul.addr %s198, 4
      %s200 = scalar_lea.vmem %s0, %s199
      %p201 = pneg %p37
      %p202 = pneg %p34
      %p203 = pneg %p58
      %p204 = pneg %p55
      %p205 = pneg %p79
      %p206 = pneg %p76
      %p207 = pneg %p100
      %p208 = pneg %p97
      %p209 = pneg %p121
      %p210 = pneg %p118
      %p211 = pneg %p147
      %p212 = pneg %p144
      %s213 = smul.u32 13, %s16
      %p214 = scmp.lt.s32.totalorder %s213, 25
      %s215 = scalar_select %p214, %s213, 25
      %s216 = smul.addr %s215, 2
      %s217 = smul.addr %s216, 8
      %s218 = scalar_lea.vmem %s5, %s217
      %s219 = smul.u32 13, %s16
      %p220 = scmp.lt.s32.totalorder %s219, 25
      %s221 = scalar_select %p220, %s219, 25
      %s222 = smul.addr %s221, 6
      %s223 = smul.addr %s222, 4
      %s224 = scalar_lea.vmem %s0, %s223
      %s225 = smul.u32 13, %s16
      %s226 = smul.u32 13, %s16
      %p227 = scmp.lt.s32.totalorder %s226, 25
      %s228 = scalar_select %p227, %s226, 25
      %s229 = smul.addr %s228, 2
      %s230 = smul.addr %s229, 8
      %s231 = scalar_lea.vmem %s5, %s230
      %s232 = smul.u32 13, %s16
      %v233 = vld [vmem:[%s224] sm:$0xff]
      %v234 = vld [vmem:[%s224 + $0x8] sm:$0xff]
      %v235 = vld [vmem:[%s224 + $0x10] sm:$0xff]
      %v236 = vld [vmem:[%s224 + $0x18] sm:$0xff]
      %v237 = vld [vmem:[%s224 + $0x20] sm:$0xff]
      %v238 = vld [vmem:[%s224 + $0x28] sm:$0xff]
      %v239 = vld [vmem:[%s224 + $0x30] sm:$0xff]
      %v240 = vld [vmem:[%s224 + $0x38] sm:$0xff]
      %v241 = vld [vmem:[%s224 + $0x40] sm:$0xff]
      %v242 = vld [vmem:[%s224 + $0x48] sm:$0xff]
      %v243 = vld [vmem:[%s224 + $0x50] sm:$0xff]
      %v244 = vld [vmem:[%s224 + $0x58] sm:$0xff]
      %v245 = vld [vmem:[%s224 + $0x60] sm:$0xff]
      %v246 = vld [vmem:[%s224 + $0x68] sm:$0xff]
      %v247 = vld [vmem:[%s224 + $0x70] sm:$0xff]
      %v248 = vld [vmem:[%s224 + $0x78] sm:$0xff]
      %v249 = vld [vmem:[%s224 + $0x80] sm:$0xff]
      %v250 = vld [vmem:[%s224 + $0x88] sm:$0xff]
      %v251 = vld [vmem:[%s224 + $0x90] sm:$0xff]
      %v252 = vld [vmem:[%s224 + $0x98] sm:$0xff]
      %v253 = vld [vmem:[%s224 + $0xa0] sm:$0xff]
      %v254 = vld [vmem:[%s224 + $0xa8] sm:$0xff]
      %v255 = vld [vmem:[%s224 + $0xb0] sm:$0xff]
      %v256 = vld [vmem:[%s224 + $0xb8] sm:$0xff]
      %v257 = vld [vmem:[%s224 + $0xc0] sm:$0xff]
      %v258 = vld [vmem:[%s224 + $0xc8] sm:$0xff]
      %v259 = vld [vmem:[%s224 + $0xd0] sm:$0xff]
      %v260 = vld [vmem:[%s224 + $0xd8] sm:$0xff]
      %v261 = vld [vmem:[%s224 + $0xe0] sm:$0xff]
      %v262 = vld [vmem:[%s224 + $0xe8] sm:$0xff]
      %v263 = vld [vmem:[%s224 + $0xf0] sm:$0xff]
      %v264 = vld [vmem:[%s224 + $0xf8] sm:$0xff]
      %v265 = vld [vmem:[%s224 + $0x100] sm:$0xff]
      %v266 = vld [vmem:[%s224 + $0x108] sm:$0xff]
      %v267 = vld [vmem:[%s224 + $0x110] sm:$0xff]
      %v268 = vld [vmem:[%s224 + $0x118] sm:$0xff]
      %v269 = vld [vmem:[%s224 + $0x120] sm:$0xff]
      %v270 = vld [vmem:[%s224 + $0x128] sm:$0xff]
      %v271 = vld [vmem:[%s224 + $0x130] sm:$0xff]
      %v272 = vld [vmem:[%s1] sm:$0xff]
      %v273 = vld [vmem:[%s1 + $0x8] sm:$0xff]
      %v274 = vld [vmem:[%s1 + $0x10] sm:$0xff]
      %v275 = vld [vmem:[%s1 + $0x18] sm:$0xff]
      %v276 = vld [vmem:[%s1 + $0x20] sm:$0xff]
      %v277 = vld [vmem:[%s1 + $0x28] sm:$0xff]
      %v278 = vld [vmem:[%s1 + $0x30] sm:$0xff]
      %v279 = vld [vmem:[%s1 + $0x38] sm:$0xff]
      %v280 = vld [vmem:[%s1 + $0x40] sm:$0xff]
      %v281 = vld [vmem:[%s1 + $0x48] sm:$0xff]
      %v282 = vld [vmem:[%s1 + $0x50] sm:$0xff]
      %v283 = vld [vmem:[%s1 + $0x58] sm:$0xff]
      %v284 = vld [vmem:[%s1 + $0x60] sm:$0xff]
      %v285 = vld [vmem:[%s1 + $0x68] sm:$0xff]
      %v286 = vld [vmem:[%s1 + $0x70] sm:$0xff]
      %v287 = vld [vmem:[%s1 + $0x78] sm:$0xff]
      %v288 = vld [vmem:[%s1 + $0x80] sm:$0xff]
      %v289 = vld [vmem:[%s1 + $0x88] sm:$0xff]
      %v290 = vld [vmem:[%s1 + $0x90] sm:$0xff]
      %v291 = vld [vmem:[%s1 + $0x98] sm:$0xff]
      %v292 = vld [vmem:[%s1 + $0xa0] sm:$0xff]
      %v293 = vld [vmem:[%s1 + $0xa8] sm:$0xff]
      %v294 = vld [vmem:[%s1 + $0xb0] sm:$0xff]
      %v295 = vld [vmem:[%s1 + $0xb8] sm:$0xff]
      %v296 = vld [vmem:[%s1 + $0xc0] sm:$0xff]
      %v297 = vld [vmem:[%s1 + $0xc8] sm:$0xff]
      %v298 = vld [vmem:[%s1 + $0xd0] sm:$0xff]
      %v299 = vld [vmem:[%s1 + $0xd8] sm:$0xff]
      %v300 = vld [vmem:[%s1 + $0xe0] sm:$0xff]
      %v301 = vld [vmem:[%s1 + $0xe8] sm:$0xff]
      %v302 = vld [vmem:[%s1 + $0xf0] sm:$0xff]
      %v303 = vld [vmem:[%s1 + $0xf8] sm:$0xff]
      %v304 = vld [vmem:[%s1 + $0x100] sm:$0xff]
      %v305 = vld [vmem:[%s1 + $0x108] sm:$0xff]
      %v306 = vld [vmem:[%s1 + $0x110] sm:$0xff]
      %v307 = vld [vmem:[%s1 + $0x118] sm:$0xff]
      %v308 = vld [vmem:[%s1 + $0x120] sm:$0xff]
      %v309 = vld [vmem:[%s1 + $0x128] sm:$0xff]
      %v310 = vld [vmem:[%s1 + $0x130] sm:$0xff]
      %v311 = vld [vmem:[%s1 + $0x138] sm:$0xff]
      %v312 = vld [vmem:[%s1 + $0x140] sm:$0xff]
      %v313 = vld [vmem:[%s1 + $0x148] sm:$0xff]
      %v314 = vld [vmem:[%s1 + $0x150] sm:$0xff]
      %v315 = vld [vmem:[%s1 + $0x158] sm:$0xff]
      %v316 = vld [vmem:[%s1 + $0x160] sm:$0xff]
      %v317 = vld [vmem:[%s1 + $0x168] sm:$0xff]
      %v318 = vld [vmem:[%s1 + $0x170] sm:$0xff]
      %v319 = vld [vmem:[%s1 + $0x178] sm:$0xff]
      %v320 = vld [vmem:[%s1 + $0x180] sm:$0xff]
      %v321 = vld [vmem:[%s1 + $0x188] sm:$0xff]
      %v322 = vld [vmem:[%s1 + $0x190] sm:$0xff]
      %v323 = vld [vmem:[%s1 + $0x198] sm:$0xff]
      %v324 = vld [vmem:[%s1 + $0x1a0] sm:$0xff]
      %v325 = vld [vmem:[%s1 + $0x1a8] sm:$0xff]
      %v326 = vld [vmem:[%s1 + $0x1b0] sm:$0xff]
      %v327 = vld [vmem:[%s1 + $0x1b8] sm:$0xff]
      %v328 = vld [vmem:[%s1 + $0x1c0] sm:$0xff]
      %v329 = vld [vmem:[%s1 + $0x1c8] sm:$0xff]
      %v330 = vld [vmem:[%s1 + $0x1d0] sm:$0xff]
      %v331 = vld [vmem:[%s1 + $0x1d8] sm:$0xff]
      %v332 = vld [vmem:[%s1 + $0x1e0] sm:$0xff]
      %v333 = vld [vmem:[%s1 + $0x1e8] sm:$0xff]
      %v334 = vld [vmem:[%s1 + $0x1f0] sm:$0xff]
      %v335 = vld [vmem:[%s1 + $0x1f8] sm:$0xff]
      %v336 = vld [vmem:[%s1 + $0x200] sm:$0xff]
      %v337 = vld [vmem:[%s1 + $0x208] sm:$0xff]
      %v338 = vld [vmem:[%s1 + $0x210] sm:$0xff]
      %v339 = vld [vmem:[%s1 + $0x218] sm:$0xff]
      %v340 = vld [vmem:[%s1 + $0x220] sm:$0xff]
      %v341 = vld [vmem:[%s1 + $0x228] sm:$0xff]
      %v342 = vld [vmem:[%s1 + $0x230] sm:$0xff]
      %v343 = vld [vmem:[%s1 + $0x238] sm:$0xff]
      %v344 = vld [vmem:[%s1 + $0x240] sm:$0xff]
      %v345 = vld [vmem:[%s1 + $0x248] sm:$0xff]
      %v346 = vld [vmem:[%s1 + $0x250] sm:$0xff]
      %v347 = vld [vmem:[%s1 + $0x258] sm:$0xff]
      %v348 = vld [vmem:[%s1 + $0x260] sm:$0xff]
      %v349 = vld [vmem:[%s1 + $0x268] sm:$0xff]
      %v350 = vld [vmem:[%s1 + $0x270] sm:$0xff]
      %v351 = vld [vmem:[%s1 + $0x278] sm:$0xff]
      %v352 = vld [vmem:[%s1 + $0x280] sm:$0xff]
      %v353 = vld [vmem:[%s1 + $0x288] sm:$0xff]
      %v354 = vld [vmem:[%s1 + $0x290] sm:$0xff]
      %v355 = vld [vmem:[%s1 + $0x298] sm:$0xff]
      %v356 = vld [vmem:[%s1 + $0x2a0] sm:$0xff]
      %v357 = vld [vmem:[%s1 + $0x2a8] sm:$0xff]
      %v358 = vld [vmem:[%s1 + $0x2b0] sm:$0xff]
      %v359 = vld [vmem:[%s1 + $0x2b8] sm:$0xff]
      %v360 = vld [vmem:[%s1 + $0x2c0] sm:$0xff]
      %v361 = vld [vmem:[%s1 + $0x2c8] sm:$0xff]
      %v362 = vld [vmem:[%s1 + $0x2d0] sm:$0xff]
      %v363 = vld [vmem:[%s1 + $0x2d8] sm:$0xff]
      %v364 = vld [vmem:[%s1 + $0x2e0] sm:$0xff]
      %v365 = vld [vmem:[%s1 + $0x2e8] sm:$0xff]
      %v366 = vld [vmem:[%s1 + $0x2f0] sm:$0xff]
      %v367 = vld [vmem:[%s1 + $0x2f8] sm:$0xff]
      %v368 = vld [vmem:[%s1 + $0x300] sm:$0xff]
      %v369 = vld [vmem:[%s1 + $0x308] sm:$0xff]
      %v370 = vld [vmem:[%s1 + $0x310] sm:$0xff]
      %v371 = vld [vmem:[%s1 + $0x318] sm:$0xff]
      %v372 = vld [vmem:[%s1 + $0x320] sm:$0xff]
      %v373 = vld [vmem:[%s1 + $0x328] sm:$0xff]
      %v374 = vld [vmem:[%s1 + $0x330] sm:$0xff]
      %v375 = vld [vmem:[%s1 + $0x338] sm:$0xff]
      %v376 = vld [vmem:[%s1 + $0x340] sm:$0xff]
      %v377 = vld [vmem:[%s1 + $0x348] sm:$0xff]
      %v378 = vld [vmem:[%s1 + $0x350] sm:$0xff]
      %v379 = vld [vmem:[%s1 + $0x358] sm:$0xff]
      %v380 = vld [vmem:[%s1 + $0x360] sm:$0xff]
      %v381 = vld [vmem:[%s1 + $0x368] sm:$0xff]
      %v382 = vld [vmem:[%s1 + $0x370] sm:$0xff]
      %v383 = vld [vmem:[%s1 + $0x378] sm:$0xff]
      %v384 = vld [vmem:[%s1 + $0x380] sm:$0xff]
      %v385 = vld [vmem:[%s1 + $0x388] sm:$0xff]
      %v386 = vld [vmem:[%s1 + $0x390] sm:$0xff]
      %v387 = vld [vmem:[%s1 + $0x398] sm:$0xff]
      %v388 = vld [vmem:[%s1 + $0x3a0] sm:$0xff]
      %v389 = vld [vmem:[%s1 + $0x3a8] sm:$0xff]
      %v390 = vld [vmem:[%s1 + $0x3b0] sm:$0xff]
      %v391 = vld [vmem:[%s1 + $0x3b8] sm:$0xff]
      %v392 = vld [vmem:[%s1 + $0x3c0] sm:$0xff]
      %v393 = vld [vmem:[%s1 + $0x3c8] sm:$0xff]
      %v394 = vld [vmem:[%s1 + $0x3d0] sm:$0xff]
      %v395 = vld [vmem:[%s1 + $0x3d8] sm:$0xff]
      %v396 = vld [vmem:[%s1 + $0x3e0] sm:$0xff]
      %v397 = vld [vmem:[%s1 + $0x3e8] sm:$0xff]
      %v398 = vld [vmem:[%s1 + $0x3f0] sm:$0xff]
      %v399 = vld [vmem:[%s1 + $0x3f8] sm:$0xff]
      %v400 = vld [vmem:[%s1 + $0x400] sm:$0xff]
      %v401 = vld [vmem:[%s1 + $0x408] sm:$0xff]
      %v402 = vld [vmem:[%s1 + $0x410] sm:$0xff]
      %v403 = vld [vmem:[%s1 + $0x418] sm:$0xff]
      %v404 = vld [vmem:[%s1 + $0x420] sm:$0xff]
      %v405 = vld [vmem:[%s1 + $0x428] sm:$0xff]
      %v406 = vld [vmem:[%s1 + $0x430] sm:$0xff]
      %v407 = vld [vmem:[%s1 + $0x438] sm:$0xff]
      %v408 = vld [vmem:[%s1 + $0x440] sm:$0xff]
      %v409 = vld [vmem:[%s1 + $0x448] sm:$0xff]
      %v410 = vld [vmem:[%s1 + $0x450] sm:$0xff]
      %v411 = vld [vmem:[%s1 + $0x458] sm:$0xff]
      %v412 = vld [vmem:[%s1 + $0x460] sm:$0xff]
      %v413 = vld [vmem:[%s1 + $0x468] sm:$0xff]
      %v414 = vld [vmem:[%s1 + $0x470] sm:$0xff]
      %v415 = vld [vmem:[%s1 + $0x478] sm:$0xff]
      %v416 = vld [vmem:[%s1 + $0x480] sm:$0xff]
      %v417 = vld [vmem:[%s1 + $0x488] sm:$0xff]
      %v418 = vld [vmem:[%s1 + $0x490] sm:$0xff]
      %v419 = vld [vmem:[%s1 + $0x498] sm:$0xff]
      %v420 = vld [vmem:[%s1 + $0x4a0] sm:$0xff]
      %v421 = vld [vmem:[%s1 + $0x4a8] sm:$0xff]
      %v422 = vld [vmem:[%s1 + $0x4b0] sm:$0xff]
      %v423 = vld [vmem:[%s1 + $0x4b8] sm:$0xff]
      %v424 = vld [vmem:[%s1 + $0x4c0] sm:$0xff]
      %v425 = vld [vmem:[%s1 + $0x4c8] sm:$0xff]
      %v426 = vld [vmem:[%s1 + $0x4d0] sm:$0xff]
      %v427 = vld [vmem:[%s1 + $0x4d8] sm:$0xff]
      %v428 = vld [vmem:[%s1 + $0x4e0] sm:$0xff]
      %v429 = vld [vmem:[%s1 + $0x4e8] sm:$0xff]
      %v430 = vld [vmem:[%s1 + $0x4f0] sm:$0xff]
      %v431 = vld [vmem:[%s1 + $0x4f8] sm:$0xff]
      %v432 = vld [vmem:[%s1 + $0x500] sm:$0xff]
      %v433 = vld [vmem:[%s1 + $0x508] sm:$0xff]
      %v434 = vld [vmem:[%s1 + $0x510] sm:$0xff]
      %v435 = vld [vmem:[%s1 + $0x518] sm:$0xff]
      %v436 = vld [vmem:[%s1 + $0x520] sm:$0xff]
      %v437 = vld [vmem:[%s1 + $0x528] sm:$0xff]
      %v438 = vld [vmem:[%s1 + $0x530] sm:$0xff]
      %v439 = vld [vmem:[%s1 + $0x538] sm:$0xff]
      %v440 = vld [vmem:[%s1 + $0x540] sm:$0xff]
      %v441 = vld [vmem:[%s1 + $0x548] sm:$0xff]
      %v442 = vld [vmem:[%s1 + $0x550] sm:$0xff]
      %v443 = vld [vmem:[%s1 + $0x558] sm:$0xff]
      %v444 = vld [vmem:[%s1 + $0x560] sm:$0xff]
      %v445 = vld [vmem:[%s1 + $0x568] sm:$0xff]
      %v446 = vld [vmem:[%s1 + $0x570] sm:$0xff]
      %v447 = vld [vmem:[%s1 + $0x578] sm:$0xff]
      %v448 = vld [vmem:[%s1 + $0x580] sm:$0xff]
      %v449 = vld [vmem:[%s1 + $0x588] sm:$0xff]
      %v450 = vld [vmem:[%s1 + $0x590] sm:$0xff]
      %v451 = vld [vmem:[%s1 + $0x598] sm:$0xff]
      %v452 = vld [vmem:[%s1 + $0x5a0] sm:$0xff]
      %v453 = vld [vmem:[%s1 + $0x5a8] sm:$0xff]
      %v454 = vld [vmem:[%s1 + $0x5b0] sm:$0xff]
      %v455 = vld [vmem:[%s1 + $0x5b8] sm:$0xff]
      %v456 = vld [vmem:[%s1 + $0x5c0] sm:$0xff]
      %v457 = vld [vmem:[%s1 + $0x5c8] sm:$0xff]
      %v458 = vld [vmem:[%s1 + $0x5d0] sm:$0xff]
      %v459 = vld [vmem:[%s1 + $0x5d8] sm:$0xff]
      %v460 = vld [vmem:[%s1 + $0x5e0] sm:$0xff]
      %v461 = vld [vmem:[%s1 + $0x5e8] sm:$0xff]
      %v462 = vld [vmem:[%s1 + $0x5f0] sm:$0xff]
      %v463 = vld [vmem:[%s1 + $0x5f8] sm:$0xff]
      %v464 = vld [vmem:[%s2] sm:$0xf]
      %v466 = vlaneseq
      %v467 = vshrl.u32 %v466, 7
      %v468 = vsub.s32 0, %v467
      %v469 = vrot.slane %v464, %v468
      %v470 = vlaneseq
      %v471 = vshrl.u32 %v470, 7
      %v472 = vsub.s32 1, %v471
      %v473 = vrot.slane %v464, %v472
      %v474 = vlaneseq
      %v475 = vshrl.u32 %v474, 7
      %v476 = vsub.s32 2, %v475
      %v477 = vrot.slane %v464, %v476
      %v478 = vlaneseq
      %v479 = vshrl.u32 %v478, 7
      %v480 = vsub.s32 3, %v479
      %v481 = vrot.slane %v464, %v480
      %v525 = vunpack.c.l.b16 %v233
      %v526 = vunpack.c.h.b16 %v233
      %v527 = vunpack.c.l.b16 %v234
      %v528 = vunpack.c.h.b16 %v234
      %v529 = vunpack.c.l.b16 %v235
      %v530 = vunpack.c.h.b16 %v235
      %v531 = vunpack.c.l.b16 %v236
      %v532 = vunpack.c.h.b16 %v236
      %v533 = vunpack.c.l.b16 %v237
      %v534 = vunpack.c.h.b16 %v237
      %v535 = vunpack.c.l.b16 %v238
      %v536 = vunpack.c.h.b16 %v238
      %v537 = vunpack.c.l.b16 %v239
      %v538 = vunpack.c.h.b16 %v239
      %v539 = vunpack.c.l.b16 %v240
      %v540 = vunpack.c.h.b16 %v240
      %v541 = vunpack.c.l.b16 %v241
      %v542 = vunpack.c.h.b16 %v241
      %v543 = vunpack.c.l.b16 %v242
      %v544 = vunpack.c.h.b16 %v242
      %v545 = vunpack.c.l.b16 %v243
      %v546 = vunpack.c.h.b16 %v243
      %v547 = vunpack.c.l.b16 %v244
      %v548 = vunpack.c.h.b16 %v244
      %v549 = vunpack.c.l.b16 %v245
      %v550 = vunpack.c.h.b16 %v245
      %v551 = vunpack.c.l.b16 %v246
      %v552 = vunpack.c.h.b16 %v246
      %v553 = vunpack.c.l.b16 %v247
      %v554 = vunpack.c.h.b16 %v247
      %v555 = vunpack.c.l.b16 %v248
      %v556 = vunpack.c.h.b16 %v248
      %v557 = vunpack.c.l.b16 %v249
      %v558 = vunpack.c.h.b16 %v249
      %v559 = vunpack.c.l.b16 %v250
      %v560 = vunpack.c.h.b16 %v250
      %v561 = vunpack.c.l.b16 %v251
      %v562 = vunpack.c.h.b16 %v251
      %v563 = vunpack.c.l.b16 %v252
      %v564 = vunpack.c.h.b16 %v252
      %v565 = vunpack.c.l.b16 %v253
      %v566 = vunpack.c.h.b16 %v253
      %v567 = vunpack.c.l.b16 %v254
      %v568 = vunpack.c.h.b16 %v254
      %v569 = vunpack.c.l.b16 %v255
      %v570 = vunpack.c.h.b16 %v255
      %v571 = vunpack.c.l.b16 %v256
      %v572 = vunpack.c.h.b16 %v256
      %v573 = vunpack.c.l.b16 %v257
      %v574 = vunpack.c.h.b16 %v257
      %v575 = vunpack.c.l.b16 %v258
      %v576 = vunpack.c.h.b16 %v258
      %v577 = vunpack.c.l.b16 %v259
      %v578 = vunpack.c.h.b16 %v259
      %v579 = vunpack.c.l.b16 %v260
      %v580 = vunpack.c.h.b16 %v260
      %v581 = vunpack.c.l.b16 %v261
      %v582 = vunpack.c.h.b16 %v261
      %v583 = vunpack.c.l.b16 %v262
      %v584 = vunpack.c.h.b16 %v262
      %v585 = vunpack.c.l.b16 %v263
      %v586 = vunpack.c.h.b16 %v263
      %v587 = vunpack.c.l.b16 %v264
      %v588 = vunpack.c.h.b16 %v264
      %v589 = vunpack.c.l.b16 %v265
      %v590 = vunpack.c.h.b16 %v265
      %v591 = vunpack.c.l.b16 %v266
      %v592 = vunpack.c.h.b16 %v266
      %v593 = vunpack.c.l.b16 %v267
      %v594 = vunpack.c.h.b16 %v267
      %v595 = vunpack.c.l.b16 %v268
      %v596 = vunpack.c.h.b16 %v268
      %v597 = vunpack.c.l.b16 %v269
      %v598 = vunpack.c.h.b16 %v269
      %v599 = vunpack.c.l.b16 %v270
      %v600 = vunpack.c.h.b16 %v270
      %v601 = vunpack.c.l.b16 %v271
      %v602 = vunpack.c.h.b16 %v271
      %v603 = vpack.c.b16 %v531, %v525
      %v604 = vpack.c.b16 %v532, %v526
      %v605 = vpack.c.b16 %v533, %v527
      %v606 = vpack.c.b16 %v534, %v528
      %v607 = vpack.c.b16 %v535, %v529
      %v608 = vpack.c.b16 %v536, %v530
      %v609 = vpack.c.b16 %v543, %v537
      %v610 = vpack.c.b16 %v544, %v538
      %v611 = vpack.c.b16 %v545, %v539
      %v612 = vpack.c.b16 %v546, %v540
      %v613 = vpack.c.b16 %v547, %v541
      %v614 = vpack.c.b16 %v548, %v542
      %v615 = vpack.c.b16 %v555, %v549
      %v616 = vpack.c.b16 %v556, %v550
      %v617 = vpack.c.b16 %v557, %v551
      %v618 = vpack.c.b16 %v558, %v552
      %v619 = vpack.c.b16 %v559, %v553
      %v620 = vpack.c.b16 %v560, %v554
      %v621 = vpack.c.b16 %v567, %v561
      %v622 = vpack.c.b16 %v568, %v562
      %v623 = vpack.c.b16 %v569, %v563
      %v624 = vpack.c.b16 %v570, %v564
      %v625 = vpack.c.b16 %v571, %v565
      %v626 = vpack.c.b16 %v572, %v566
      %v627 = vpack.c.b16 %v579, %v573
      %v628 = vpack.c.b16 %v580, %v574
      %v629 = vpack.c.b16 %v581, %v575
      %v630 = vpack.c.b16 %v582, %v576
      %v631 = vpack.c.b16 %v583, %v577
      %v632 = vpack.c.b16 %v584, %v578
      %v633 = vpack.c.b16 %v591, %v585
      %v634 = vpack.c.b16 %v592, %v586
      %v635 = vpack.c.b16 %v593, %v587
      %v636 = vpack.c.b16 %v594, %v588
      %v637 = vpack.c.b16 %v595, %v589
      %v638 = vpack.c.b16 %v596, %v590
      %v639 = vpack.c.b16 %v597, %v597
      %v640 = vpack.c.b16 %v598, %v598
      %v641 = vpack.c.b16 %v599, %v599
      %v642 = vpack.c.b16 %v600, %v600
      %v643 = vpack.c.b16 %v601, %v601
      %v644 = vpack.c.b16 %v602, %v602
      %v879 = vunpack.c.l.b16 %v272
      %v880 = vunpack.c.h.b16 %v272
      %v881 = vunpack.c.l.b16 %v273
      %v882 = vunpack.c.h.b16 %v273
      %v883 = vunpack.c.l.b16 %v274
      %v884 = vunpack.c.h.b16 %v274
      %v885 = vunpack.c.l.b16 %v275
      %v886 = vunpack.c.h.b16 %v275
      %v887 = vunpack.c.l.b16 %v276
      %v888 = vunpack.c.h.b16 %v276
      %v889 = vunpack.c.l.b16 %v277
      %v890 = vunpack.c.h.b16 %v277
      %v891 = vunpack.c.l.b16 %v278
      %v892 = vunpack.c.h.b16 %v278
      %v893 = vunpack.c.l.b16 %v279
      %v894 = vunpack.c.h.b16 %v279
      %v895 = vunpack.c.l.b16 %v280
      %v896 = vunpack.c.h.b16 %v280
      %v897 = vunpack.c.l.b16 %v281
      %v898 = vunpack.c.h.b16 %v281
      %v899 = vunpack.c.l.b16 %v282
      %v900 = vunpack.c.h.b16 %v282
      %v901 = vunpack.c.l.b16 %v283
      %v902 = vunpack.c.h.b16 %v283
      %v903 = vunpack.c.l.b16 %v284
      %v904 = vunpack.c.h.b16 %v284
      %v905 = vunpack.c.l.b16 %v285
      %v906 = vunpack.c.h.b16 %v285
      %v907 = vunpack.c.l.b16 %v286
      %v908 = vunpack.c.h.b16 %v286
      %v909 = vunpack.c.l.b16 %v287
      %v910 = vunpack.c.h.b16 %v287
      %v911 = vunpack.c.l.b16 %v288
      %v912 = vunpack.c.h.b16 %v288
      %v913 = vunpack.c.l.b16 %v289
      %v914 = vunpack.c.h.b16 %v289
      %v915 = vunpack.c.l.b16 %v290
      %v916 = vunpack.c.h.b16 %v290
      %v917 = vunpack.c.l.b16 %v291
      %v918 = vunpack.c.h.b16 %v291
      %v919 = vunpack.c.l.b16 %v292
      %v920 = vunpack.c.h.b16 %v292
      %v921 = vunpack.c.l.b16 %v293
      %v922 = vunpack.c.h.b16 %v293
      %v923 = vunpack.c.l.b16 %v294
      %v924 = vunpack.c.h.b16 %v294
      %v925 = vunpack.c.l.b16 %v295
      %v926 = vunpack.c.h.b16 %v295
      %v927 = vunpack.c.l.b16 %v296
      %v928 = vunpack.c.h.b16 %v296
      %v929 = vunpack.c.l.b16 %v297
      %v930 = vunpack.c.h.b16 %v297
      %v931 = vunpack.c.l.b16 %v298
      %v932 = vunpack.c.h.b16 %v298
      %v933 = vunpack.c.l.b16 %v299
      %v934 = vunpack.c.h.b16 %v299
      %v935 = vunpack.c.l.b16 %v300
      %v936 = vunpack.c.h.b16 %v300
      %v937 = vunpack.c.l.b16 %v301
      %v938 = vunpack.c.h.b16 %v301
      %v939 = vunpack.c.l.b16 %v302
      %v940 = vunpack.c.h.b16 %v302
      %v941 = vunpack.c.l.b16 %v303
      %v942 = vunpack.c.h.b16 %v303
      %v943 = vunpack.c.l.b16 %v304
      %v944 = vunpack.c.h.b16 %v304
      %v945 = vunpack.c.l.b16 %v305
      %v946 = vunpack.c.h.b16 %v305
      %v947 = vunpack.c.l.b16 %v306
      %v948 = vunpack.c.h.b16 %v306
      %v949 = vunpack.c.l.b16 %v307
      %v950 = vunpack.c.h.b16 %v307
      %v951 = vunpack.c.l.b16 %v308
      %v952 = vunpack.c.h.b16 %v308
      %v953 = vunpack.c.l.b16 %v309
      %v954 = vunpack.c.h.b16 %v309
      %v955 = vunpack.c.l.b16 %v310
      %v956 = vunpack.c.h.b16 %v310
      %v957 = vunpack.c.l.b16 %v311
      %v958 = vunpack.c.h.b16 %v311
      %v959 = vunpack.c.l.b16 %v312
      %v960 = vunpack.c.h.b16 %v312
      %v961 = vunpack.c.l.b16 %v313
      %v962 = vunpack.c.h.b16 %v313
      %v963 = vunpack.c.l.b16 %v314
      %v964 = vunpack.c.h.b16 %v314
      %v965 = vunpack.c.l.b16 %v315
      %v966 = vunpack.c.h.b16 %v315
      %v967 = vunpack.c.l.b16 %v316
      %v968 = vunpack.c.h.b16 %v316
      %v969 = vunpack.c.l.b16 %v317
      %v970 = vunpack.c.h.b16 %v317
      %v971 = vunpack.c.l.b16 %v318
      %v972 = vunpack.c.h.b16 %v318
      %v973 = vunpack.c.l.b16 %v319
      %v974 = vunpack.c.h.b16 %v319
      %v975 = vunpack.c.l.b16 %v320
      %v976 = vunpack.c.h.b16 %v320
      %v977 = vunpack.c.l.b16 %v321
      %v978 = vunpack.c.h.b16 %v321
      %v979 = vunpack.c.l.b16 %v322
      %v980 = vunpack.c.h.b16 %v322
      %v981 = vunpack.c.l.b16 %v323
      %v982 = vunpack.c.h.b16 %v323
      %v983 = vunpack.c.l.b16 %v324
      %v984 = vunpack.c.h.b16 %v324
      %v985 = vunpack.c.l.b16 %v325
      %v986 = vunpack.c.h.b16 %v325
      %v987 = vunpack.c.l.b16 %v326
      %v988 = vunpack.c.h.b16 %v326
      %v989 = vunpack.c.l.b16 %v327
      %v990 = vunpack.c.h.b16 %v327
      %v991 = vunpack.c.l.b16 %v328
      %v992 = vunpack.c.h.b16 %v328
      %v993 = vunpack.c.l.b16 %v329
      %v994 = vunpack.c.h.b16 %v329
      %v995 = vunpack.c.l.b16 %v330
      %v996 = vunpack.c.h.b16 %v330
      %v997 = vunpack.c.l.b16 %v331
      %v998 = vunpack.c.h.b16 %v331
      %v999 = vunpack.c.l.b16 %v332
      %v1000 = vunpack.c.h.b16 %v332
      %v1001 = vunpack.c.l.b16 %v333
      %v1002 = vunpack.c.h.b16 %v333
      %v1003 = vunpack.c.l.b16 %v334
      %v1004 = vunpack.c.h.b16 %v334
      %v1005 = vunpack.c.l.b16 %v335
      %v1006 = vunpack.c.h.b16 %v335
      %v1007 = vunpack.c.l.b16 %v336
      %v1008 = vunpack.c.h.b16 %v336
      %v1009 = vunpack.c.l.b16 %v337
      %v1010 = vunpack.c.h.b16 %v337
      %v1011 = vunpack.c.l.b16 %v338
      %v1012 = vunpack.c.h.b16 %v338
      %v1013 = vunpack.c.l.b16 %v339
      %v1014 = vunpack.c.h.b16 %v339
      %v1015 = vunpack.c.l.b16 %v340
      %v1016 = vunpack.c.h.b16 %v340
      %v1017 = vunpack.c.l.b16 %v341
      %v1018 = vunpack.c.h.b16 %v341
      %v1019 = vunpack.c.l.b16 %v342
      %v1020 = vunpack.c.h.b16 %v342
      %v1021 = vunpack.c.l.b16 %v343
      %v1022 = vunpack.c.h.b16 %v343
      %v1023 = vunpack.c.l.b16 %v344
      %v1024 = vunpack.c.h.b16 %v344
      %v1025 = vunpack.c.l.b16 %v345
      %v1026 = vunpack.c.h.b16 %v345
      %v1027 = vunpack.c.l.b16 %v346
      %v1028 = vunpack.c.h.b16 %v346
      %v1029 = vunpack.c.l.b16 %v347
      %v1030 = vunpack.c.h.b16 %v347
      %v1031 = vunpack.c.l.b16 %v348
      %v1032 = vunpack.c.h.b16 %v348
      %v1033 = vunpack.c.l.b16 %v349
      %v1034 = vunpack.c.h.b16 %v349
      %v1035 = vunpack.c.l.b16 %v350
      %v1036 = vunpack.c.h.b16 %v350
      %v1037 = vunpack.c.l.b16 %v351
      %v1038 = vunpack.c.h.b16 %v351
      %v1039 = vunpack.c.l.b16 %v352
      %v1040 = vunpack.c.h.b16 %v352
      %v1041 = vunpack.c.l.b16 %v353
      %v1042 = vunpack.c.h.b16 %v353
      %v1043 = vunpack.c.l.b16 %v354
      %v1044 = vunpack.c.h.b16 %v354
      %v1045 = vunpack.c.l.b16 %v355
      %v1046 = vunpack.c.h.b16 %v355
      %v1047 = vunpack.c.l.b16 %v356
      %v1048 = vunpack.c.h.b16 %v356
      %v1049 = vunpack.c.l.b16 %v357
      %v1050 = vunpack.c.h.b16 %v357
      %v1051 = vunpack.c.l.b16 %v358
      %v1052 = vunpack.c.h.b16 %v358
      %v1053 = vunpack.c.l.b16 %v359
      %v1054 = vunpack.c.h.b16 %v359
      %v1055 = vunpack.c.l.b16 %v360
      %v1056 = vunpack.c.h.b16 %v360
      %v1057 = vunpack.c.l.b16 %v361
      %v1058 = vunpack.c.h.b16 %v361
      %v1059 = vunpack.c.l.b16 %v362
      %v1060 = vunpack.c.h.b16 %v362
      %v1061 = vunpack.c.l.b16 %v363
      %v1062 = vunpack.c.h.b16 %v363
      %v1063 = vunpack.c.l.b16 %v364
      %v1064 = vunpack.c.h.b16 %v364
      %v1065 = vunpack.c.l.b16 %v365
      %v1066 = vunpack.c.h.b16 %v365
      %v1067 = vunpack.c.l.b16 %v366
      %v1068 = vunpack.c.h.b16 %v366
      %v1069 = vunpack.c.l.b16 %v367
      %v1070 = vunpack.c.h.b16 %v367
      %v1071 = vunpack.c.l.b16 %v368
      %v1072 = vunpack.c.h.b16 %v368
      %v1073 = vunpack.c.l.b16 %v369
      %v1074 = vunpack.c.h.b16 %v369
      %v1075 = vunpack.c.l.b16 %v370
      %v1076 = vunpack.c.h.b16 %v370
      %v1077 = vunpack.c.l.b16 %v371
      %v1078 = vunpack.c.h.b16 %v371
      %v1079 = vunpack.c.l.b16 %v372
      %v1080 = vunpack.c.h.b16 %v372
      %v1081 = vunpack.c.l.b16 %v373
      %v1082 = vunpack.c.h.b16 %v373
      %v1083 = vunpack.c.l.b16 %v374
      %v1084 = vunpack.c.h.b16 %v374
      %v1085 = vunpack.c.l.b16 %v375
      %v1086 = vunpack.c.h.b16 %v375
      %v1087 = vunpack.c.l.b16 %v376
      %v1088 = vunpack.c.h.b16 %v376
      %v1089 = vunpack.c.l.b16 %v377
      %v1090 = vunpack.c.h.b16 %v377
      %v1091 = vunpack.c.l.b16 %v378
      %v1092 = vunpack.c.h.b16 %v378
      %v1093 = vunpack.c.l.b16 %v379
      %v1094 = vunpack.c.h.b16 %v379
      %v1095 = vunpack.c.l.b16 %v380
      %v1096 = vunpack.c.h.b16 %v380
      %v1097 = vunpack.c.l.b16 %v381
      %v1098 = vunpack.c.h.b16 %v381
      %v1099 = vunpack.c.l.b16 %v382
      %v1100 = vunpack.c.h.b16 %v382
      %v1101 = vunpack.c.l.b16 %v383
      %v1102 = vunpack.c.h.b16 %v383
      %v1103 = vunpack.c.l.b16 %v384
      %v1104 = vunpack.c.h.b16 %v384
      %v1105 = vunpack.c.l.b16 %v385
      %v1106 = vunpack.c.h.b16 %v385
      %v1107 = vunpack.c.l.b16 %v386
      %v1108 = vunpack.c.h.b16 %v386
      %v1109 = vunpack.c.l.b16 %v387
      %v1110 = vunpack.c.h.b16 %v387
      %v1111 = vunpack.c.l.b16 %v388
      %v1112 = vunpack.c.h.b16 %v388
      %v1113 = vunpack.c.l.b16 %v389
      %v1114 = vunpack.c.h.b16 %v389
      %v1115 = vunpack.c.l.b16 %v390
      %v1116 = vunpack.c.h.b16 %v390
      %v1117 = vunpack.c.l.b16 %v391
      %v1118 = vunpack.c.h.b16 %v391
      %v1119 = vunpack.c.l.b16 %v392
      %v1120 = vunpack.c.h.b16 %v392
      %v1121 = vunpack.c.l.b16 %v393
      %v1122 = vunpack.c.h.b16 %v393
      %v1123 = vunpack.c.l.b16 %v394
      %v1124 = vunpack.c.h.b16 %v394
      %v1125 = vunpack.c.l.b16 %v395
      %v1126 = vunpack.c.h.b16 %v395
      %v1127 = vunpack.c.l.b16 %v396
      %v1128 = vunpack.c.h.b16 %v396
      %v1129 = vunpack.c.l.b16 %v397
      %v1130 = vunpack.c.h.b16 %v397
      %v1131 = vunpack.c.l.b16 %v398
      %v1132 = vunpack.c.h.b16 %v398
      %v1133 = vunpack.c.l.b16 %v399
      %v1134 = vunpack.c.h.b16 %v399
      %v1135 = vunpack.c.l.b16 %v400
      %v1136 = vunpack.c.h.b16 %v400
      %v1137 = vunpack.c.l.b16 %v401
      %v1138 = vunpack.c.h.b16 %v401
      %v1139 = vunpack.c.l.b16 %v402
      %v1140 = vunpack.c.h.b16 %v402
      %v1141 = vunpack.c.l.b16 %v403
      %v1142 = vunpack.c.h.b16 %v403
      %v1143 = vunpack.c.l.b16 %v404
      %v1144 = vunpack.c.h.b16 %v404
      %v1145 = vunpack.c.l.b16 %v405
      %v1146 = vunpack.c.h.b16 %v405
      %v1147 = vunpack.c.l.b16 %v406
      %v1148 = vunpack.c.h.b16 %v406
      %v1149 = vunpack.c.l.b16 %v407
      %v1150 = vunpack.c.h.b16 %v407
      %v1151 = vunpack.c.l.b16 %v408
      %v1152 = vunpack.c.h.b16 %v408
      %v1153 = vunpack.c.l.b16 %v409
      %v1154 = vunpack.c.h.b16 %v409
      %v1155 = vunpack.c.l.b16 %v410
      %v1156 = vunpack.c.h.b16 %v410
      %v1157 = vunpack.c.l.b16 %v411
      %v1158 = vunpack.c.h.b16 %v411
      %v1159 = vunpack.c.l.b16 %v412
      %v1160 = vunpack.c.h.b16 %v412
      %v1161 = vunpack.c.l.b16 %v413
      %v1162 = vunpack.c.h.b16 %v413
      %v1163 = vunpack.c.l.b16 %v414
      %v1164 = vunpack.c.h.b16 %v414
      %v1165 = vunpack.c.l.b16 %v415
      %v1166 = vunpack.c.h.b16 %v415
      %v1167 = vunpack.c.l.b16 %v416
      %v1168 = vunpack.c.h.b16 %v416
      %v1169 = vunpack.c.l.b16 %v417
      %v1170 = vunpack.c.h.b16 %v417
      %v1171 = vunpack.c.l.b16 %v418
      %v1172 = vunpack.c.h.b16 %v418
      %v1173 = vunpack.c.l.b16 %v419
      %v1174 = vunpack.c.h.b16 %v419
      %v1175 = vunpack.c.l.b16 %v420
      %v1176 = vunpack.c.h.b16 %v420
      %v1177 = vunpack.c.l.b16 %v421
      %v1178 = vunpack.c.h.b16 %v421
      %v1179 = vunpack.c.l.b16 %v422
      %v1180 = vunpack.c.h.b16 %v422
      %v1181 = vunpack.c.l.b16 %v423
      %v1182 = vunpack.c.h.b16 %v423
      %v1183 = vunpack.c.l.b16 %v424
      %v1184 = vunpack.c.h.b16 %v424
      %v1185 = vunpack.c.l.b16 %v425
      %v1186 = vunpack.c.h.b16 %v425
      %v1187 = vunpack.c.l.b16 %v426
      %v1188 = vunpack.c.h.b16 %v426
      %v1189 = vunpack.c.l.b16 %v427
      %v1190 = vunpack.c.h.b16 %v427
      %v1191 = vunpack.c.l.b16 %v428
      %v1192 = vunpack.c.h.b16 %v428
      %v1193 = vunpack.c.l.b16 %v429
      %v1194 = vunpack.c.h.b16 %v429
      %v1195 = vunpack.c.l.b16 %v430
      %v1196 = vunpack.c.h.b16 %v430
      %v1197 = vunpack.c.l.b16 %v431
      %v1198 = vunpack.c.h.b16 %v431
      %v1199 = vunpack.c.l.b16 %v432
      %v1200 = vunpack.c.h.b16 %v432
      %v1201 = vunpack.c.l.b16 %v433
      %v1202 = vunpack.c.h.b16 %v433
      %v1203 = vunpack.c.l.b16 %v434
      %v1204 = vunpack.c.h.b16 %v434
      %v1205 = vunpack.c.l.b16 %v435
      %v1206 = vunpack.c.h.b16 %v435
      %v1207 = vunpack.c.l.b16 %v436
      %v1208 = vunpack.c.h.b16 %v436
      %v1209 = vunpack.c.l.b16 %v437
      %v1210 = vunpack.c.h.b16 %v437
      %v1211 = vunpack.c.l.b16 %v438
      %v1212 = vunpack.c.h.b16 %v438
      %v1213 = vunpack.c.l.b16 %v439
      %v1214 = vunpack.c.h.b16 %v439
      %v1215 = vunpack.c.l.b16 %v440
      %v1216 = vunpack.c.h.b16 %v440
      %v1217 = vunpack.c.l.b16 %v441
      %v1218 = vunpack.c.h.b16 %v441
      %v1219 = vunpack.c.l.b16 %v442
      %v1220 = vunpack.c.h.b16 %v442
      %v1221 = vunpack.c.l.b16 %v443
      %v1222 = vunpack.c.h.b16 %v443
      %v1223 = vunpack.c.l.b16 %v444
      %v1224 = vunpack.c.h.b16 %v444
      %v1225 = vunpack.c.l.b16 %v445
      %v1226 = vunpack.c.h.b16 %v445
      %v1227 = vunpack.c.l.b16 %v446
      %v1228 = vunpack.c.h.b16 %v446
      %v1229 = vunpack.c.l.b16 %v447
      %v1230 = vunpack.c.h.b16 %v447
      %v1231 = vunpack.c.l.b16 %v448
      %v1232 = vunpack.c.h.b16 %v448
      %v1233 = vunpack.c.l.b16 %v449
      %v1234 = vunpack.c.h.b16 %v449
      %v1235 = vunpack.c.l.b16 %v450
      %v1236 = vunpack.c.h.b16 %v450
      %v1237 = vunpack.c.l.b16 %v451
      %v1238 = vunpack.c.h.b16 %v451
      %v1239 = vunpack.c.l.b16 %v452
      %v1240 = vunpack.c.h.b16 %v452
      %v1241 = vunpack.c.l.b16 %v453
      %v1242 = vunpack.c.h.b16 %v453
      %v1243 = vunpack.c.l.b16 %v454
      %v1244 = vunpack.c.h.b16 %v454
      %v1245 = vunpack.c.l.b16 %v455
      %v1246 = vunpack.c.h.b16 %v455
      %v1247 = vunpack.c.l.b16 %v456
      %v1248 = vunpack.c.h.b16 %v456
      %v1249 = vunpack.c.l.b16 %v457
      %v1250 = vunpack.c.h.b16 %v457
      %v1251 = vunpack.c.l.b16 %v458
      %v1252 = vunpack.c.h.b16 %v458
      %v1253 = vunpack.c.l.b16 %v459
      %v1254 = vunpack.c.h.b16 %v459
      %v1255 = vunpack.c.l.b16 %v460
      %v1256 = vunpack.c.h.b16 %v460
      %v1257 = vunpack.c.l.b16 %v461
      %v1258 = vunpack.c.h.b16 %v461
      %v1259 = vunpack.c.l.b16 %v462
      %v1260 = vunpack.c.h.b16 %v462
      %v1261 = vunpack.c.l.b16 %v463
      %v1262 = vunpack.c.h.b16 %v463
      %v1263 = vpack.c.b16 %v883, %v879
      %v1264 = vpack.c.b16 %v884, %v880
      %v1265 = vpack.c.b16 %v885, %v881
      %v1266 = vpack.c.b16 %v886, %v882
      %v1267 = vpack.c.b16 %v891, %v887
      %v1268 = vpack.c.b16 %v892, %v888
      %v1269 = vpack.c.b16 %v893, %v889
      %v1270 = vpack.c.b16 %v894, %v890
      %v1271 = vpack.c.b16 %v899, %v895
      %v1272 = vpack.c.b16 %v900, %v896
      %v1273 = vpack.c.b16 %v901, %v897
      %v1274 = vpack.c.b16 %v902, %v898
      %v1275 = vpack.c.b16 %v907, %v903
      %v1276 = vpack.c.b16 %v908, %v904
      %v1277 = vpack.c.b16 %v909, %v905
      %v1278 = vpack.c.b16 %v910, %v906
      %v1279 = vpack.c.b16 %v915, %v911
      %v1280 = vpack.c.b16 %v916, %v912
      %v1281 = vpack.c.b16 %v917, %v913
      %v1282 = vpack.c.b16 %v918, %v914
      %v1283 = vpack.c.b16 %v923, %v919
      %v1284 = vpack.c.b16 %v924, %v920
      %v1285 = vpack.c.b16 %v925, %v921
      %v1286 = vpack.c.b16 %v926, %v922
      %v1287 = vpack.c.b16 %v931, %v927
      %v1288 = vpack.c.b16 %v932, %v928
      %v1289 = vpack.c.b16 %v933, %v929
      %v1290 = vpack.c.b16 %v934, %v930
      %v1291 = vpack.c.b16 %v939, %v935
      %v1292 = vpack.c.b16 %v940, %v936
      %v1293 = vpack.c.b16 %v941, %v937
      %v1294 = vpack.c.b16 %v942, %v938
      %v1295 = vpack.c.b16 %v947, %v943
      %v1296 = vpack.c.b16 %v948, %v944
      %v1297 = vpack.c.b16 %v949, %v945
      %v1298 = vpack.c.b16 %v950, %v946
      %v1299 = vpack.c.b16 %v955, %v951
      %v1300 = vpack.c.b16 %v956, %v952
      %v1301 = vpack.c.b16 %v957, %v953
      %v1302 = vpack.c.b16 %v958, %v954
      %v1303 = vpack.c.b16 %v963, %v959
      %v1304 = vpack.c.b16 %v964, %v960
      %v1305 = vpack.c.b16 %v965, %v961
      %v1306 = vpack.c.b16 %v966, %v962
      %v1307 = vpack.c.b16 %v971, %v967
      %v1308 = vpack.c.b16 %v972, %v968
      %v1309 = vpack.c.b16 %v973, %v969
      %v1310 = vpack.c.b16 %v974, %v970
      %v1311 = vpack.c.b16 %v979, %v975
      %v1312 = vpack.c.b16 %v980, %v976
      %v1313 = vpack.c.b16 %v981, %v977
      %v1314 = vpack.c.b16 %v982, %v978
      %v1315 = vpack.c.b16 %v987, %v983
      %v1316 = vpack.c.b16 %v988, %v984
      %v1317 = vpack.c.b16 %v989, %v985
      %v1318 = vpack.c.b16 %v990, %v986
      %v1319 = vpack.c.b16 %v995, %v991
      %v1320 = vpack.c.b16 %v996, %v992
      %v1321 = vpack.c.b16 %v997, %v993
      %v1322 = vpack.c.b16 %v998, %v994
      %v1323 = vpack.c.b16 %v1003, %v999
      %v1324 = vpack.c.b16 %v1004, %v1000
      %v1325 = vpack.c.b16 %v1005, %v1001
      %v1326 = vpack.c.b16 %v1006, %v1002
      %v1327 = vpack.c.b16 %v1011, %v1007
      %v1328 = vpack.c.b16 %v1012, %v1008
      %v1329 = vpack.c.b16 %v1013, %v1009
      %v1330 = vpack.c.b16 %v1014, %v1010
      %v1331 = vpack.c.b16 %v1019, %v1015
      %v1332 = vpack.c.b16 %v1020, %v1016
      %v1333 = vpack.c.b16 %v1021, %v1017
      %v1334 = vpack.c.b16 %v1022, %v1018
      %v1335 = vpack.c.b16 %v1027, %v1023
      %v1336 = vpack.c.b16 %v1028, %v1024
      %v1337 = vpack.c.b16 %v1029, %v1025
      %v1338 = vpack.c.b16 %v1030, %v1026
      %v1339 = vpack.c.b16 %v1035, %v1031
      %v1340 = vpack.c.b16 %v1036, %v1032
      %v1341 = vpack.c.b16 %v1037, %v1033
      %v1342 = vpack.c.b16 %v1038, %v1034
      %v1343 = vpack.c.b16 %v1043, %v1039
      %v1344 = vpack.c.b16 %v1044, %v1040
      %v1345 = vpack.c.b16 %v1045, %v1041
      %v1346 = vpack.c.b16 %v1046, %v1042
      %v1347 = vpack.c.b16 %v1051, %v1047
      %v1348 = vpack.c.b16 %v1052, %v1048
      %v1349 = vpack.c.b16 %v1053, %v1049
      %v1350 = vpack.c.b16 %v1054, %v1050
      %v1351 = vpack.c.b16 %v1059, %v1055
      %v1352 = vpack.c.b16 %v1060, %v1056
      %v1353 = vpack.c.b16 %v1061, %v1057
      %v1354 = vpack.c.b16 %v1062, %v1058
      %v1355 = vpack.c.b16 %v1067, %v1063
      %v1356 = vpack.c.b16 %v1068, %v1064
      %v1357 = vpack.c.b16 %v1069, %v1065
      %v1358 = vpack.c.b16 %v1070, %v1066
      %v1359 = vpack.c.b16 %v1075, %v1071
      %v1360 = vpack.c.b16 %v1076, %v1072
      %v1361 = vpack.c.b16 %v1077, %v1073
      %v1362 = vpack.c.b16 %v1078, %v1074
      %v1363 = vpack.c.b16 %v1083, %v1079
      %v1364 = vpack.c.b16 %v1084, %v1080
      %v1365 = vpack.c.b16 %v1085, %v1081
      %v1366 = vpack.c.b16 %v1086, %v1082
      %v1367 = vpack.c.b16 %v1091, %v1087
      %v1368 = vpack.c.b16 %v1092, %v1088
      %v1369 = vpack.c.b16 %v1093, %v1089
      %v1370 = vpack.c.b16 %v1094, %v1090
      %v1371 = vpack.c.b16 %v1099, %v1095
      %v1372 = vpack.c.b16 %v1100, %v1096
      %v1373 = vpack.c.b16 %v1101, %v1097
      %v1374 = vpack.c.b16 %v1102, %v1098
      %v1375 = vpack.c.b16 %v1107, %v1103
      %v1376 = vpack.c.b16 %v1108, %v1104
      %v1377 = vpack.c.b16 %v1109, %v1105
      %v1378 = vpack.c.b16 %v1110, %v1106
      %v1379 = vpack.c.b16 %v1115, %v1111
      %v1380 = vpack.c.b16 %v1116, %v1112
      %v1381 = vpack.c.b16 %v1117, %v1113
      %v1382 = vpack.c.b16 %v1118, %v1114
      %v1383 = vpack.c.b16 %v1123, %v1119
      %v1384 = vpack.c.b16 %v1124, %v1120
      %v1385 = vpack.c.b16 %v1125, %v1121
      %v1386 = vpack.c.b16 %v1126, %v1122
      %v1387 = vpack.c.b16 %v1131, %v1127
      %v1388 = vpack.c.b16 %v1132, %v1128
      %v1389 = vpack.c.b16 %v1133, %v1129
      %v1390 = vpack.c.b16 %v1134, %v1130
      %v1391 = vpack.c.b16 %v1139, %v1135
      %v1392 = vpack.c.b16 %v1140, %v1136
      %v1393 = vpack.c.b16 %v1141, %v1137
      %v1394 = vpack.c.b16 %v1142, %v1138
      %v1395 = vpack.c.b16 %v1147, %v1143
      %v1396 = vpack.c.b16 %v1148, %v1144
      %v1397 = vpack.c.b16 %v1149, %v1145
      %v1398 = vpack.c.b16 %v1150, %v1146
      %v1399 = vpack.c.b16 %v1155, %v1151
      %v1400 = vpack.c.b16 %v1156, %v1152
      %v1401 = vpack.c.b16 %v1157, %v1153
      %v1402 = vpack.c.b16 %v1158, %v1154
      %v1403 = vpack.c.b16 %v1163, %v1159
      %v1404 = vpack.c.b16 %v1164, %v1160
      %v1405 = vpack.c.b16 %v1165, %v1161
      %v1406 = vpack.c.b16 %v1166, %v1162
      %v1407 = vpack.c.b16 %v1171, %v1167
      %v1408 = vpack.c.b16 %v1172, %v1168
      %v1409 = vpack.c.b16 %v1173, %v1169
      %v1410 = vpack.c.b16 %v1174, %v1170
      %v1411 = vpack.c.b16 %v1179, %v1175
      %v1412 = vpack.c.b16 %v1180, %v1176
      %v1413 = vpack.c.b16 %v1181, %v1177
      %v1414 = vpack.c.b16 %v1182, %v1178
      %v1415 = vpack.c.b16 %v1187, %v1183
      %v1416 = vpack.c.b16 %v1188, %v1184
      %v1417 = vpack.c.b16 %v1189, %v1185
      %v1418 = vpack.c.b16 %v1190, %v1186
      %v1419 = vpack.c.b16 %v1195, %v1191
      %v1420 = vpack.c.b16 %v1196, %v1192
      %v1421 = vpack.c.b16 %v1197, %v1193
      %v1422 = vpack.c.b16 %v1198, %v1194
      %v1423 = vpack.c.b16 %v1203, %v1199
      %v1424 = vpack.c.b16 %v1204, %v1200
      %v1425 = vpack.c.b16 %v1205, %v1201
      %v1426 = vpack.c.b16 %v1206, %v1202
      %v1427 = vpack.c.b16 %v1211, %v1207
      %v1428 = vpack.c.b16 %v1212, %v1208
      %v1429 = vpack.c.b16 %v1213, %v1209
      %v1430 = vpack.c.b16 %v1214, %v1210
      %v1431 = vpack.c.b16 %v1219, %v1215
      %v1432 = vpack.c.b16 %v1220, %v1216
      %v1433 = vpack.c.b16 %v1221, %v1217
      %v1434 = vpack.c.b16 %v1222, %v1218
      %v1435 = vpack.c.b16 %v1227, %v1223
      %v1436 = vpack.c.b16 %v1228, %v1224
      %v1437 = vpack.c.b16 %v1229, %v1225
      %v1438 = vpack.c.b16 %v1230, %v1226
      %v1439 = vpack.c.b16 %v1235, %v1231
      %v1440 = vpack.c.b16 %v1236, %v1232
      %v1441 = vpack.c.b16 %v1237, %v1233
      %v1442 = vpack.c.b16 %v1238, %v1234
      %v1443 = vpack.c.b16 %v1243, %v1239
      %v1444 = vpack.c.b16 %v1244, %v1240
      %v1445 = vpack.c.b16 %v1245, %v1241
      %v1446 = vpack.c.b16 %v1246, %v1242
      %v1447 = vpack.c.b16 %v1251, %v1247
      %v1448 = vpack.c.b16 %v1252, %v1248
      %v1449 = vpack.c.b16 %v1253, %v1249
      %v1450 = vpack.c.b16 %v1254, %v1250
      %v1451 = vpack.c.b16 %v1259, %v1255
      %v1452 = vpack.c.b16 %v1260, %v1256
      %v1453 = vpack.c.b16 %v1261, %v1257
      %v1454 = vpack.c.b16 %v1262, %v1258
      %1647 = vmatprep.subr.bf16.mxu0 %v1292
      %1648 = vmatpush1.bf16.msra.mxu0 %v1291
      %1649 = vmatprep.subr.bf16.mxu0 %v1288
      %1650 = vmatpush1.bf16.msra.mxu0 %v1287
      %1651 = vmatprep.subr.bf16.mxu0 %v1284
      %1652 = vmatpush1.bf16.msra.mxu0 %v1283
      %1653 = vmatprep.subr.bf16.mxu0 %v1280
      %1654 = vmatpush1.bf16.msra.mxu0 %v1279
      %1655 = vmatprep.subr.bf16.mxu0 %v1276
      %1656 = vmatpush1.bf16.msra.mxu0 %v1275
      %1657 = vmatprep.subr.bf16.mxu0 %v1272
      %1658 = vmatpush1.bf16.msra.mxu0 %v1271
      %1659 = vmatprep.subr.bf16.mxu0 %v1268
      %1660 = vmatpush1.bf16.msra.mxu0 %v1267
      %1661 = vmatprep.subr.bf16.mxu0 %v1264
      %1662 = vmatpush1.bf16.msra.mxu0 %v1263
      %1663 = vmatprep.subr.bf16.mxu0 %v1324
      %1664 = vmatpush2.bf16.msra.mxu0 %v1323
      %1665 = vmatprep.subr.bf16.mxu0 %v1320
      %1666 = vmatpush2.bf16.msra.mxu0 %v1319
      %1667 = vmatprep.subr.bf16.mxu0 %v1316
      %1668 = vmatpush2.bf16.msra.mxu0 %v1315
      %1669 = vmatprep.subr.bf16.mxu0 %v1312
      %1670 = vmatpush2.bf16.msra.mxu0 %v1311
      %1671 = vmatprep.subr.bf16.mxu0 %v1308
      %1672 = vmatpush2.bf16.msra.mxu0 %v1307
      %1673 = vmatprep.subr.bf16.mxu0 %v1304
      %1674 = vmatpush2.bf16.msra.mxu0 %v1303
      %1675 = vmatprep.subr.bf16.mxu0 %v1300
      %1676 = vmatpush2.bf16.msra.mxu0 %v1299
      %1677 = vmatprep.subr.bf16.mxu0 %v1296
      %1678 = vmatpush2.bf16.msra.mxu0 %v1295
      %1679 = vmatprep.mubr.bf16.mxu0 %v604
      %1680 = vmatmul.mubr.bf16.gmra.mxu0 %v603
      %v1681 = vpop.f32.mrf.mxu0
      %v1682 = vadd.f32 %v469, %v1681
      %v1683 = vpop.f32.mrf.mxu0
      %v1684 = vadd.f32 %v473, %v1683
      %v1685 = vpop.f32.mrf.mxu0
      %v1686 = vadd.f32 %v469, %v1685
      %v1687 = vpop.f32.mrf.mxu0
      %v1688 = vadd.f32 %v473, %v1687
      %1689 = vmatprep.mubr.bf16.mxu0 %v610
      %1690 = vmatmul.mubr.bf16.gmra.mxu0 %v609
      %v1691 = vpop.f32.mrf.mxu0
      %v1692 = vadd.f32 %v469, %v1691
      %v1693 = vpop.f32.mrf.mxu0
      %v1694 = vadd.f32 %v473, %v1693
      %v1695 = vpop.f32.mrf.mxu0
      %v1696 = vadd.f32 %v469, %v1695
      %v1697 = vpop.f32.mrf.mxu0
      %v1698 = vadd.f32 %v473, %v1697
      %1699 = vmatprep.mubr.bf16.mxu0 %v616
      %1700 = vmatmul.mubr.bf16.gmra.mxu0 %v615
      %v1701 = vpop.f32.mrf.mxu0
      %v1702 = vadd.f32 %v469, %v1701
      %v1703 = vpop.f32.mrf.mxu0
      %v1704 = vadd.f32 %v473, %v1703
      %v1705 = vpop.f32.mrf.mxu0
      %v1706 = vadd.f32 %v469, %v1705
      %v1707 = vpop.f32.mrf.mxu0
      %v1708 = vadd.f32 %v473, %v1707
      %1709 = vmatprep.mubr.bf16.mxu0 %v622
      %1710 = vmatmul.mubr.bf16.gmra.mxu0 %v621
      %v1711 = vpop.f32.mrf.mxu0
      %v1712 = vadd.f32 %v469, %v1711
      %v1713 = vpop.f32.mrf.mxu0
      %v1714 = vadd.f32 %v473, %v1713
      %v1715 = vpop.f32.mrf.mxu0
      %v1716 = vadd.f32 %v469, %v1715
      %v1717 = vpop.f32.mrf.mxu0
      %v1718 = vadd.f32 %v473, %v1717
      %1719 = vmatprep.mubr.bf16.mxu0 %v628
      %1720 = vmatmul.mubr.bf16.gmra.mxu0 %v627
      %v1721 = vpop.f32.mrf.mxu0
      %v1722 = vadd.f32 %v469, %v1721
      %v1723 = vpop.f32.mrf.mxu0
      %v1724 = vadd.f32 %v473, %v1723
      %v1725 = vpop.f32.mrf.mxu0
      %v1726 = vadd.f32 %v469, %v1725
      %v1727 = vpop.f32.mrf.mxu0
      %v1728 = vadd.f32 %v473, %v1727
      %1729 = vmatprep.mubr.bf16.mxu0 %v634
      %1730 = vmatmul.mubr.bf16.gmra.mxu0 %v633
      %v1731 = vpop.f32.mrf.mxu0
      %v1732 = vadd.f32 %v469, %v1731
      %v1733 = vpop.f32.mrf.mxu0
      %v1734 = vadd.f32 %v473, %v1733
      %v1735 = vpop.f32.mrf.mxu0
      %v1736 = vadd.f32 %v469, %v1735
      %v1737 = vpop.f32.mrf.mxu0
      %v1738 = vadd.f32 %v473, %v1737
      %1739 = vmatprep.mubr.bf16.mxu0 %v640
      %1740 = vmatmul.mubr.bf16.gmra.mxu0 %v639
      %v1741 = vpop.f32.mrf.mxu0
      %v1742 = vadd.f32 %v469, %v1741
      %v1743 = vpop.f32.mrf.mxu0
      %v1744 = vadd.f32 %v473, %v1743
      %v1745 = vpop.f32.mrf.mxu0
      %v1746 = vpop.f32.mrf.mxu0
      %1747 = vdwg.mxu0
      %1748 = vmatprep.subr.bf16.mxu0 %v1356
      %1749 = vmatpush1.bf16.msra.mxu0 %v1355
      %1750 = vmatprep.subr.bf16.mxu0 %v1352
      %1751 = vmatpush1.bf16.msra.mxu0 %v1351
      %1752 = vmatprep.subr.bf16.mxu0 %v1348
      %1753 = vmatpush1.bf16.msra.mxu0 %v1347
      %1754 = vmatprep.subr.bf16.mxu0 %v1344
      %1755 = vmatpush1.bf16.msra.mxu0 %v1343
      %1756 = vmatprep.subr.bf16.mxu0 %v1340
      %1757 = vmatpush1.bf16.msra.mxu0 %v1339
      %1758 = vmatprep.subr.bf16.mxu0 %v1336
      %1759 = vmatpush1.bf16.msra.mxu0 %v1335
      %1760 = vmatprep.subr.bf16.mxu0 %v1332
      %1761 = vmatpush1.bf16.msra.mxu0 %v1331
      %1762 = vmatprep.subr.bf16.mxu0 %v1328
      %1763 = vmatpush1.bf16.msra.mxu0 %v1327
      %1764 = vmatprep.subr.bf16.mxu0 %v1388
      %1765 = vmatpush2.bf16.msra.mxu0 %v1387
      %1766 = vmatprep.subr.bf16.mxu0 %v1384
      %1767 = vmatpush2.bf16.msra.mxu0 %v1383
      %1768 = vmatprep.subr.bf16.mxu0 %v1380
      %1769 = vmatpush2.bf16.msra.mxu0 %v1379
      %1770 = vmatprep.subr.bf16.mxu0 %v1376
      %1771 = vmatpush2.bf16.msra.mxu0 %v1375
      %1772 = vmatprep.subr.bf16.mxu0 %v1372
      %1773 = vmatpush2.bf16.msra.mxu0 %v1371
      %1774 = vmatprep.subr.bf16.mxu0 %v1368
      %1775 = vmatpush2.bf16.msra.mxu0 %v1367
      %1776 = vmatprep.subr.bf16.mxu0 %v1364
      %1777 = vmatpush2.bf16.msra.mxu0 %v1363
      %1778 = vmatprep.subr.bf16.mxu0 %v1360
      %1779 = vmatpush2.bf16.msra.mxu0 %v1359
      %1780 = vmatprep.mubr.bf16.mxu0 %v606
      %1781 = vmatmul.mubr.bf16.gmra.mxu0 %v605
      %v1782 = vpop.f32.mrf.mxu0
      %v1783 = vadd.f32 %v1682, %v1782
      %v1784 = vpop.f32.mrf.mxu0
      %v1785 = vadd.f32 %v1684, %v1784
      %v1786 = vpop.f32.mrf.mxu0
      %v1787 = vadd.f32 %v1686, %v1786
      %v1788 = vpop.f32.mrf.mxu0
      %v1789 = vadd.f32 %v1688, %v1788
      %1790 = vmatprep.mubr.bf16.mxu0 %v612
      %1791 = vmatmul.mubr.bf16.gmra.mxu0 %v611
      %v1792 = vpop.f32.mrf.mxu0
      %v1793 = vadd.f32 %v1692, %v1792
      %v1794 = vpop.f32.mrf.mxu0
      %v1795 = vadd.f32 %v1694, %v1794
      %v1796 = vpop.f32.mrf.mxu0
      %v1797 = vadd.f32 %v1696, %v1796
      %v1798 = vpop.f32.mrf.mxu0
      %v1799 = vadd.f32 %v1698, %v1798
      %1800 = vmatprep.mubr.bf16.mxu0 %v618
      %1801 = vmatmul.mubr.bf16.gmra.mxu0 %v617
      %v1802 = vpop.f32.mrf.mxu0
      %v1803 = vadd.f32 %v1702, %v1802
      %v1804 = vpop.f32.mrf.mxu0
      %v1805 = vadd.f32 %v1704, %v1804
      %v1806 = vpop.f32.mrf.mxu0
      %v1807 = vadd.f32 %v1706, %v1806
      %v1808 = vpop.f32.mrf.mxu0
      %v1809 = vadd.f32 %v1708, %v1808
      %1810 = vmatprep.mubr.bf16.mxu0 %v624
      %1811 = vmatmul.mubr.bf16.gmra.mxu0 %v623
      %v1812 = vpop.f32.mrf.mxu0
      %v1813 = vadd.f32 %v1712, %v1812
      %v1814 = vpop.f32.mrf.mxu0
      %v1815 = vadd.f32 %v1714, %v1814
      %v1816 = vpop.f32.mrf.mxu0
      %v1817 = vadd.f32 %v1716, %v1816
      %v1818 = vpop.f32.mrf.mxu0
      %v1819 = vadd.f32 %v1718, %v1818
      %1820 = vmatprep.mubr.bf16.mxu0 %v630
      %1821 = vmatmul.mubr.bf16.gmra.mxu0 %v629
      %v1822 = vpop.f32.mrf.mxu0
      %v1823 = vadd.f32 %v1722, %v1822
      %v1824 = vpop.f32.mrf.mxu0
      %v1825 = vadd.f32 %v1724, %v1824
      %v1826 = vpop.f32.mrf.mxu0
      %v1827 = vadd.f32 %v1726, %v1826
      %v1828 = vpop.f32.mrf.mxu0
      %v1829 = vadd.f32 %v1728, %v1828
      %1830 = vmatprep.mubr.bf16.mxu0 %v636
      %1831 = vmatmul.mubr.bf16.gmra.mxu0 %v635
      %v1832 = vpop.f32.mrf.mxu0
      %v1833 = vadd.f32 %v1732, %v1832
      %v1834 = vpop.f32.mrf.mxu0
      %v1835 = vadd.f32 %v1734, %v1834
      %v1836 = vpop.f32.mrf.mxu0
      %v1837 = vadd.f32 %v1736, %v1836
      %v1838 = vpop.f32.mrf.mxu0
      %v1839 = vadd.f32 %v1738, %v1838
      %1840 = vmatprep.mubr.bf16.mxu0 %v642
      %1841 = vmatmul.mubr.bf16.gmra.mxu0 %v641
      %v1842 = vpop.f32.mrf.mxu0
      %v1843 = vadd.f32 %v1742, %v1842
      %v1844 = vpop.f32.mrf.mxu0
      %v1845 = vadd.f32 %v1744, %v1844
      %v1846 = vpop.f32.mrf.mxu0
      %v1847 = vpop.f32.mrf.mxu0
      %1848 = vdwg.mxu0
      %1849 = vmatprep.subr.bf16.mxu0 %v1420
      %1850 = vmatpush1.bf16.msra.mxu0 %v1419
      %1851 = vmatprep.subr.bf16.mxu0 %v1416
      %1852 = vmatpush1.bf16.msra.mxu0 %v1415
      %1853 = vmatprep.subr.bf16.mxu0 %v1412
      %1854 = vmatpush1.bf16.msra.mxu0 %v1411
      %1855 = vmatprep.subr.bf16.mxu0 %v1408
      %1856 = vmatpush1.bf16.msra.mxu0 %v1407
      %1857 = vmatprep.subr.bf16.mxu0 %v1404
      %1858 = vmatpush1.bf16.msra.mxu0 %v1403
      %1859 = vmatprep.subr.bf16.mxu0 %v1400
      %1860 = vmatpush1.bf16.msra.mxu0 %v1399
      %1861 = vmatprep.subr.bf16.mxu0 %v1396
      %1862 = vmatpush1.bf16.msra.mxu0 %v1395
      %1863 = vmatprep.subr.bf16.mxu0 %v1392
      %1864 = vmatpush1.bf16.msra.mxu0 %v1391
      %1865 = vmatprep.subr.bf16.mxu0 %v1452
      %1866 = vmatpush2.bf16.msra.mxu0 %v1451
      %1867 = vmatprep.subr.bf16.mxu0 %v1448
      %1868 = vmatpush2.bf16.msra.mxu0 %v1447
      %1869 = vmatprep.subr.bf16.mxu0 %v1444
      %1870 = vmatpush2.bf16.msra.mxu0 %v1443
      %1871 = vmatprep.subr.bf16.mxu0 %v1440
      %1872 = vmatpush2.bf16.msra.mxu0 %v1439
      %1873 = vmatprep.subr.bf16.mxu0 %v1436
      %1874 = vmatpush2.bf16.msra.mxu0 %v1435
      %1875 = vmatprep.subr.bf16.mxu0 %v1432
      %1876 = vmatpush2.bf16.msra.mxu0 %v1431
      %1877 = vmatprep.subr.bf16.mxu0 %v1428
      %1878 = vmatpush2.bf16.msra.mxu0 %v1427
      %1879 = vmatprep.subr.bf16.mxu0 %v1424
      %1880 = vmatpush2.bf16.msra.mxu0 %v1423
      %1881 = vmatprep.mubr.bf16.mxu0 %v608
      %1882 = vmatmul.mubr.bf16.gmra.mxu0 %v607
      %v1883 = vpop.f32.mrf.mxu0
      %v1884 = vadd.f32 %v1783, %v1883
      %v1885 = vpop.f32.mrf.mxu0
      %v1886 = vadd.f32 %v1785, %v1885
      %v1887 = vpop.f32.mrf.mxu0
      %v1888 = vadd.f32 %v1787, %v1887
      %v1889 = vpop.f32.mrf.mxu0
      %v1890 = vadd.f32 %v1789, %v1889
      %1891 = vmatprep.mubr.bf16.mxu0 %v614
      %1892 = vmatmul.mubr.bf16.gmra.mxu0 %v613
      %v1893 = vpop.f32.mrf.mxu0
      %v1894 = vadd.f32 %v1793, %v1893
      %v1895 = vpop.f32.mrf.mxu0
      %v1896 = vadd.f32 %v1795, %v1895
      %v1897 = vpop.f32.mrf.mxu0
      %v1898 = vadd.f32 %v1797, %v1897
      %v1899 = vpop.f32.mrf.mxu0
      %v1900 = vadd.f32 %v1799, %v1899
      %1901 = vmatprep.mubr.bf16.mxu0 %v620
      %1902 = vmatmul.mubr.bf16.gmra.mxu0 %v619
      %v1903 = vpop.f32.mrf.mxu0
      %v1904 = vadd.f32 %v1803, %v1903
      %v1905 = vpop.f32.mrf.mxu0
      %v1906 = vadd.f32 %v1805, %v1905
      %v1907 = vpop.f32.mrf.mxu0
      %v1908 = vadd.f32 %v1807, %v1907
      %v1909 = vpop.f32.mrf.mxu0
      %v1910 = vadd.f32 %v1809, %v1909
      %1911 = vmatprep.mubr.bf16.mxu0 %v626
      %1912 = vmatmul.mubr.bf16.gmra.mxu0 %v625
      %v1913 = vpop.f32.mrf.mxu0
      %v1914 = vadd.f32 %v1813, %v1913
      %v1915 = vpop.f32.mrf.mxu0
      %v1916 = vadd.f32 %v1815, %v1915
      %v1917 = vpop.f32.mrf.mxu0
      %v1918 = vadd.f32 %v1817, %v1917
      %v1919 = vpop.f32.mrf.mxu0
      %v1920 = vadd.f32 %v1819, %v1919
      %1921 = vmatprep.mubr.bf16.mxu0 %v632
      %1922 = vmatmul.mubr.bf16.gmra.mxu0 %v631
      %v1923 = vpop.f32.mrf.mxu0
      %v1924 = vadd.f32 %v1823, %v1923
      %v1925 = vpop.f32.mrf.mxu0
      %v1926 = vadd.f32 %v1825, %v1925
      %v1927 = vpop.f32.mrf.mxu0
      %v1928 = vadd.f32 %v1827, %v1927
      %v1929 = vpop.f32.mrf.mxu0
      %v1930 = vadd.f32 %v1829, %v1929
      %1931 = vmatprep.mubr.bf16.mxu0 %v638
      %1932 = vmatmul.mubr.bf16.gmra.mxu0 %v637
      %v1933 = vpop.f32.mrf.mxu0
      %v1934 = vadd.f32 %v1833, %v1933
      %v1935 = vpop.f32.mrf.mxu0
      %v1936 = vadd.f32 %v1835, %v1935
      %v1937 = vpop.f32.mrf.mxu0
      %v1938 = vadd.f32 %v1837, %v1937
      %v1939 = vpop.f32.mrf.mxu0
      %v1940 = vadd.f32 %v1839, %v1939
      %1941 = vmatprep.mubr.bf16.mxu0 %v644
      %1942 = vmatmul.mubr.bf16.gmra.mxu0 %v643
      %v1943 = vpop.f32.mrf.mxu0
      %v1944 = vadd.f32 %v1843, %v1943
      %v1945 = vpop.f32.mrf.mxu0
      %v1946 = vadd.f32 %v1845, %v1945
      %v1947 = vpop.f32.mrf.mxu0
      %v1948 = vpop.f32.mrf.mxu0
      %1949 = vdwg.mxu0
      %1950 = vmatprep.subr.bf16.mxu0 %v1294
      %1951 = vmatpush1.bf16.msra.mxu0 %v1293
      %1952 = vmatprep.subr.bf16.mxu0 %v1290
      %1953 = vmatpush1.bf16.msra.mxu0 %v1289
      %1954 = vmatprep.subr.bf16.mxu0 %v1286
      %1955 = vmatpush1.bf16.msra.mxu0 %v1285
      %1956 = vmatprep.subr.bf16.mxu0 %v1282
      %1957 = vmatpush1.bf16.msra.mxu0 %v1281
      %1958 = vmatprep.subr.bf16.mxu0 %v1278
      %1959 = vmatpush1.bf16.msra.mxu0 %v1277
      %1960 = vmatprep.subr.bf16.mxu0 %v1274
      %1961 = vmatpush1.bf16.msra.mxu0 %v1273
      %1962 = vmatprep.subr.bf16.mxu0 %v1270
      %1963 = vmatpush1.bf16.msra.mxu0 %v1269
      %1964 = vmatprep.subr.bf16.mxu0 %v1266
      %1965 = vmatpush1.bf16.msra.mxu0 %v1265
      %1966 = vmatprep.subr.bf16.mxu0 %v1326
      %1967 = vmatpush2.bf16.msra.mxu0 %v1325
      %1968 = vmatprep.subr.bf16.mxu0 %v1322
      %1969 = vmatpush2.bf16.msra.mxu0 %v1321
      %1970 = vmatprep.subr.bf16.mxu0 %v1318
      %1971 = vmatpush2.bf16.msra.mxu0 %v1317
      %1972 = vmatprep.subr.bf16.mxu0 %v1314
      %1973 = vmatpush2.bf16.msra.mxu0 %v1313
      %1974 = vmatprep.subr.bf16.mxu0 %v1310
      %1975 = vmatpush2.bf16.msra.mxu0 %v1309
      %1976 = vmatprep.subr.bf16.mxu0 %v1306
      %1977 = vmatpush2.bf16.msra.mxu0 %v1305
      %1978 = vmatprep.subr.bf16.mxu0 %v1302
      %1979 = vmatpush2.bf16.msra.mxu0 %v1301
      %1980 = vmatprep.subr.bf16.mxu0 %v1298
      %1981 = vmatpush2.bf16.msra.mxu0 %v1297
      %1982 = vmatprep.mubr.bf16.mxu0 %v604
      %1983 = vmatmul.mubr.bf16.gmra.mxu0 %v603
      %v1984 = vpop.f32.mrf.mxu0
      %v1985 = vadd.f32 %v477, %v1984
      %v1986 = vpop.f32.mrf.mxu0
      %v1987 = vadd.f32 %v481, %v1986
      %v1988 = vpop.f32.mrf.mxu0
      %v1989 = vadd.f32 %v477, %v1988
      %v1990 = vpop.f32.mrf.mxu0
      %v1991 = vadd.f32 %v481, %v1990
      %1992 = vmatprep.mubr.bf16.mxu0 %v610
      %1993 = vmatmul.mubr.bf16.gmra.mxu0 %v609
      %v1994 = vpop.f32.mrf.mxu0
      %v1995 = vadd.f32 %v477, %v1994
      %v1996 = vpop.f32.mrf.mxu0
      %v1997 = vadd.f32 %v481, %v1996
      %v1998 = vpop.f32.mrf.mxu0
      %v1999 = vadd.f32 %v477, %v1998
      %v2000 = vpop.f32.mrf.mxu0
      %v2001 = vadd.f32 %v481, %v2000
      %2002 = vmatprep.mubr.bf16.mxu0 %v616
      %2003 = vmatmul.mubr.bf16.gmra.mxu0 %v615
      %v2004 = vpop.f32.mrf.mxu0
      %v2005 = vadd.f32 %v477, %v2004
      %v2006 = vpop.f32.mrf.mxu0
      %v2007 = vadd.f32 %v481, %v2006
      %v2008 = vpop.f32.mrf.mxu0
      %v2009 = vadd.f32 %v477, %v2008
      %v2010 = vpop.f32.mrf.mxu0
      %v2011 = vadd.f32 %v481, %v2010
      %2012 = vmatprep.mubr.bf16.mxu0 %v622
      %2013 = vmatmul.mubr.bf16.gmra.mxu0 %v621
      %v2014 = vpop.f32.mrf.mxu0
      %v2015 = vadd.f32 %v477, %v2014
      %v2016 = vpop.f32.mrf.mxu0
      %v2017 = vadd.f32 %v481, %v2016
      %v2018 = vpop.f32.mrf.mxu0
      %v2019 = vadd.f32 %v477, %v2018
      %v2020 = vpop.f32.mrf.mxu0
      %v2021 = vadd.f32 %v481, %v2020
      %2022 = vmatprep.mubr.bf16.mxu0 %v628
      %2023 = vmatmul.mubr.bf16.gmra.mxu0 %v627
      %v2024 = vpop.f32.mrf.mxu0
      %v2025 = vadd.f32 %v477, %v2024
      %v2026 = vpop.f32.mrf.mxu0
      %v2027 = vadd.f32 %v481, %v2026
      %v2028 = vpop.f32.mrf.mxu0
      %v2029 = vadd.f32 %v477, %v2028
      %v2030 = vpop.f32.mrf.mxu0
      %v2031 = vadd.f32 %v481, %v2030
      %2032 = vmatprep.mubr.bf16.mxu0 %v634
      %2033 = vmatmul.mubr.bf16.gmra.mxu0 %v633
      %v2034 = vpop.f32.mrf.mxu0
      %v2035 = vadd.f32 %v477, %v2034
      %v2036 = vpop.f32.mrf.mxu0
      %v2037 = vadd.f32 %v481, %v2036
      %v2038 = vpop.f32.mrf.mxu0
      %v2039 = vadd.f32 %v477, %v2038
      %v2040 = vpop.f32.mrf.mxu0
      %v2041 = vadd.f32 %v481, %v2040
      %2042 = vmatprep.mubr.bf16.mxu0 %v640
      %2043 = vmatmul.mubr.bf16.gmra.mxu0 %v639
      %v2044 = vpop.f32.mrf.mxu0
      %v2045 = vadd.f32 %v477, %v2044
      %v2046 = vpop.f32.mrf.mxu0
      %v2047 = vadd.f32 %v481, %v2046
      %v2048 = vpop.f32.mrf.mxu0
      %v2049 = vpop.f32.mrf.mxu0
      %2050 = vdwg.mxu0
      %2051 = vmatprep.subr.bf16.mxu0 %v1358
      %2052 = vmatpush1.bf16.msra.mxu0 %v1357
      %2053 = vmatprep.subr.bf16.mxu0 %v1354
      %2054 = vmatpush1.bf16.msra.mxu0 %v1353
      %2055 = vmatprep.subr.bf16.mxu0 %v1350
      %2056 = vmatpush1.bf16.msra.mxu0 %v1349
      %2057 = vmatprep.subr.bf16.mxu0 %v1346
      %2058 = vmatpush1.bf16.msra.mxu0 %v1345
      %2059 = vmatprep.subr.bf16.mxu0 %v1342
      %2060 = vmatpush1.bf16.msra.mxu0 %v1341
      %2061 = vmatprep.subr.bf16.mxu0 %v1338
      %2062 = vmatpush1.bf16.msra.mxu0 %v1337
      %2063 = vmatprep.subr.bf16.mxu0 %v1334
      %2064 = vmatpush1.bf16.msra.mxu0 %v1333
      %2065 = vmatprep.subr.bf16.mxu0 %v1330
      %2066 = vmatpush1.bf16.msra.mxu0 %v1329
      %2067 = vmatprep.subr.bf16.mxu0 %v1390
      %2068 = vmatpush2.bf16.msra.mxu0 %v1389
      %2069 = vmatprep.subr.bf16.mxu0 %v1386
      %2070 = vmatpush2.bf16.msra.mxu0 %v1385
      %2071 = vmatprep.subr.bf16.mxu0 %v1382
      %2072 = vmatpush2.bf16.msra.mxu0 %v1381
      %2073 = vmatprep.subr.bf16.mxu0 %v1378
      %2074 = vmatpush2.bf16.msra.mxu0 %v1377
      %2075 = vmatprep.subr.bf16.mxu0 %v1374
      %2076 = vmatpush2.bf16.msra.mxu0 %v1373
      %2077 = vmatprep.subr.bf16.mxu0 %v1370
      %2078 = vmatpush2.bf16.msra.mxu0 %v1369
      %2079 = vmatprep.subr.bf16.mxu0 %v1366
      %2080 = vmatpush2.bf16.msra.mxu0 %v1365
      %2081 = vmatprep.subr.bf16.mxu0 %v1362
      %2082 = vmatpush2.bf16.msra.mxu0 %v1361
      %2083 = vmatprep.mubr.bf16.mxu0 %v606
      %2084 = vmatmul.mubr.bf16.gmra.mxu0 %v605
      %v2085 = vpop.f32.mrf.mxu0
      %v2086 = vadd.f32 %v1985, %v2085
      %v2087 = vpop.f32.mrf.mxu0
      %v2088 = vadd.f32 %v1987, %v2087
      %v2089 = vpop.f32.mrf.mxu0
      %v2090 = vadd.f32 %v1989, %v2089
      %v2091 = vpop.f32.mrf.mxu0
      %v2092 = vadd.f32 %v1991, %v2091
      %2093 = vmatprep.mubr.bf16.mxu0 %v612
      %2094 = vmatmul.mubr.bf16.gmra.mxu0 %v611
      %v2095 = vpop.f32.mrf.mxu0
      %v2096 = vadd.f32 %v1995, %v2095
      %v2097 = vpop.f32.mrf.mxu0
      %v2098 = vadd.f32 %v1997, %v2097
      %v2099 = vpop.f32.mrf.mxu0
      %v2100 = vadd.f32 %v1999, %v2099
      %v2101 = vpop.f32.mrf.mxu0
      %v2102 = vadd.f32 %v2001, %v2101
      %2103 = vmatprep.mubr.bf16.mxu0 %v618
      %2104 = vmatmul.mubr.bf16.gmra.mxu0 %v617
      %v2105 = vpop.f32.mrf.mxu0
      %v2106 = vadd.f32 %v2005, %v2105
      %v2107 = vpop.f32.mrf.mxu0
      %v2108 = vadd.f32 %v2007, %v2107
      %v2109 = vpop.f32.mrf.mxu0
      %v2110 = vadd.f32 %v2009, %v2109
      %v2111 = vpop.f32.mrf.mxu0
      %v2112 = vadd.f32 %v2011, %v2111
      %2113 = vmatprep.mubr.bf16.mxu0 %v624
      %2114 = vmatmul.mubr.bf16.gmra.mxu0 %v623
      %v2115 = vpop.f32.mrf.mxu0
      %v2116 = vadd.f32 %v2015, %v2115
      %v2117 = vpop.f32.mrf.mxu0
      %v2118 = vadd.f32 %v2017, %v2117
      %v2119 = vpop.f32.mrf.mxu0
      %v2120 = vadd.f32 %v2019, %v2119
      %v2121 = vpop.f32.mrf.mxu0
      %v2122 = vadd.f32 %v2021, %v2121
      %2123 = vmatprep.mubr.bf16.mxu0 %v630
      %2124 = vmatmul.mubr.bf16.gmra.mxu0 %v629
      %v2125 = vpop.f32.mrf.mxu0
      %v2126 = vadd.f32 %v2025, %v2125
      %v2127 = vpop.f32.mrf.mxu0
      %v2128 = vadd.f32 %v2027, %v2127
      %v2129 = vpop.f32.mrf.mxu0
      %v2130 = vadd.f32 %v2029, %v2129
      %v2131 = vpop.f32.mrf.mxu0
      %v2132 = vadd.f32 %v2031, %v2131
      %2133 = vmatprep.mubr.bf16.mxu0 %v636
      %2134 = vmatmul.mubr.bf16.gmra.mxu0 %v635
      %v2135 = vpop.f32.mrf.mxu0
      %v2136 = vadd.f32 %v2035, %v2135
      %v2137 = vpop.f32.mrf.mxu0
      %v2138 = vadd.f32 %v2037, %v2137
      %v2139 = vpop.f32.mrf.mxu0
      %v2140 = vadd.f32 %v2039, %v2139
      %v2141 = vpop.f32.mrf.mxu0
      %v2142 = vadd.f32 %v2041, %v2141
      %2143 = vmatprep.mubr.bf16.mxu0 %v642
      %2144 = vmatmul.mubr.bf16.gmra.mxu0 %v641
      %v2145 = vpop.f32.mrf.mxu0
      %v2146 = vadd.f32 %v2045, %v2145
      %v2147 = vpop.f32.mrf.mxu0
      %v2148 = vadd.f32 %v2047, %v2147
      %v2149 = vpop.f32.mrf.mxu0
      %v2150 = vpop.f32.mrf.mxu0
      %2151 = vdwg.mxu0
      %2152 = vmatprep.subr.bf16.mxu0 %v1422
      %2153 = vmatpush1.bf16.msra.mxu0 %v1421
      %2154 = vmatprep.subr.bf16.mxu0 %v1418
      %2155 = vmatpush1.bf16.msra.mxu0 %v1417
      %2156 = vmatprep.subr.bf16.mxu0 %v1414
      %2157 = vmatpush1.bf16.msra.mxu0 %v1413
      %2158 = vmatprep.subr.bf16.mxu0 %v1410
      %2159 = vmatpush1.bf16.msra.mxu0 %v1409
      %2160 = vmatprep.subr.bf16.mxu0 %v1406
      %2161 = vmatpush1.bf16.msra.mxu0 %v1405
      %2162 = vmatprep.subr.bf16.mxu0 %v1402
      %2163 = vmatpush1.bf16.msra.mxu0 %v1401
      %2164 = vmatprep.subr.bf16.mxu0 %v1398
      %2165 = vmatpush1.bf16.msra.mxu0 %v1397
      %2166 = vmatprep.subr.bf16.mxu0 %v1394
      %2167 = vmatpush1.bf16.msra.mxu0 %v1393
      %2168 = vmatprep.subr.bf16.mxu0 %v1454
      %2169 = vmatpush2.bf16.msra.mxu0 %v1453
      %2170 = vmatprep.subr.bf16.mxu0 %v1450
      %2171 = vmatpush2.bf16.msra.mxu0 %v1449
      %2172 = vmatprep.subr.bf16.mxu0 %v1446
      %2173 = vmatpush2.bf16.msra.mxu0 %v1445
      %2174 = vmatprep.subr.bf16.mxu0 %v1442
      %2175 = vmatpush2.bf16.msra.mxu0 %v1441
      %2176 = vmatprep.subr.bf16.mxu0 %v1438
      %2177 = vmatpush2.bf16.msra.mxu0 %v1437
      %2178 = vmatprep.subr.bf16.mxu0 %v1434
      %2179 = vmatpush2.bf16.msra.mxu0 %v1433
      %2180 = vmatprep.subr.bf16.mxu0 %v1430
      %2181 = vmatpush2.bf16.msra.mxu0 %v1429
      %2182 = vmatprep.subr.bf16.mxu0 %v1426
      %2183 = vmatpush2.bf16.msra.mxu0 %v1425
      %2184 = vmatprep.mubr.bf16.mxu0 %v608
      %2185 = vmatmul.mubr.bf16.gmra.mxu0 %v607
      %v2186 = vpop.f32.mrf.mxu0
      %v2187 = vadd.f32 %v2086, %v2186
      %v2188 = vpop.f32.mrf.mxu0
      %v2189 = vadd.f32 %v2088, %v2188
      %v2190 = vpop.f32.mrf.mxu0
      %v2191 = vadd.f32 %v2090, %v2190
      %v2192 = vpop.f32.mrf.mxu0
      %v2193 = vadd.f32 %v2092, %v2192
      %2194 = vmatprep.mubr.bf16.mxu0 %v614
      %2195 = vmatmul.mubr.bf16.gmra.mxu0 %v613
      %v2196 = vpop.f32.mrf.mxu0
      %v2197 = vadd.f32 %v2096, %v2196
      %v2198 = vpop.f32.mrf.mxu0
      %v2199 = vadd.f32 %v2098, %v2198
      %v2200 = vpop.f32.mrf.mxu0
      %v2201 = vadd.f32 %v2100, %v2200
      %v2202 = vpop.f32.mrf.mxu0
      %v2203 = vadd.f32 %v2102, %v2202
      %2204 = vmatprep.mubr.bf16.mxu0 %v620
      %2205 = vmatmul.mubr.bf16.gmra.mxu0 %v619
      %v2206 = vpop.f32.mrf.mxu0
      %v2207 = vadd.f32 %v2106, %v2206
      %v2208 = vpop.f32.mrf.mxu0
      %v2209 = vadd.f32 %v2108, %v2208
      %v2210 = vpop.f32.mrf.mxu0
      %v2211 = vadd.f32 %v2110, %v2210
      %v2212 = vpop.f32.mrf.mxu0
      %v2213 = vadd.f32 %v2112, %v2212
      %2214 = vmatprep.mubr.bf16.mxu0 %v626
      %2215 = vmatmul.mubr.bf16.gmra.mxu0 %v625
      %v2216 = vpop.f32.mrf.mxu0
      %v2217 = vadd.f32 %v2116, %v2216
      %v2218 = vpop.f32.mrf.mxu0
      %v2219 = vadd.f32 %v2118, %v2218
      %v2220 = vpop.f32.mrf.mxu0
      %v2221 = vadd.f32 %v2120, %v2220
      %v2222 = vpop.f32.mrf.mxu0
      %v2223 = vadd.f32 %v2122, %v2222
      %2224 = vmatprep.mubr.bf16.mxu0 %v632
      %2225 = vmatmul.mubr.bf16.gmra.mxu0 %v631
      %v2226 = vpop.f32.mrf.mxu0
      %v2227 = vadd.f32 %v2126, %v2226
      %v2228 = vpop.f32.mrf.mxu0
      %v2229 = vadd.f32 %v2128, %v2228
      %v2230 = vpop.f32.mrf.mxu0
      %v2231 = vadd.f32 %v2130, %v2230
      %v2232 = vpop.f32.mrf.mxu0
      %v2233 = vadd.f32 %v2132, %v2232
      %2234 = vmatprep.mubr.bf16.mxu0 %v638
      %2235 = vmatmul.mubr.bf16.gmra.mxu0 %v637
      %v2236 = vpop.f32.mrf.mxu0
      %v2237 = vadd.f32 %v2136, %v2236
      %v2238 = vpop.f32.mrf.mxu0
      %v2239 = vadd.f32 %v2138, %v2238
      %v2240 = vpop.f32.mrf.mxu0
      %v2241 = vadd.f32 %v2140, %v2240
      %v2242 = vpop.f32.mrf.mxu0
      %v2243 = vadd.f32 %v2142, %v2242
      %2244 = vmatprep.mubr.bf16.mxu0 %v644
      %2245 = vmatmul.mubr.bf16.gmra.mxu0 %v643
      %v2246 = vpop.f32.mrf.mxu0
      %v2247 = vadd.f32 %v2146, %v2246
      %v2248 = vpop.f32.mrf.mxu0
      %v2249 = vadd.f32 %v2148, %v2248
      %v2250 = vpop.f32.mrf.mxu0
      %v2251 = vpop.f32.mrf.mxu0
      %2252 = vdwg.mxu0
      %v2253 = vmax.f32 %v1884, 0.0
      %v2254 = vmax.f32 %v1886, 0.0
      %v2255 = vmax.f32 %v2187, 0.0
      %v2256 = vmax.f32 %v2189, 0.0
      %v2257 = vmax.f32 %v1888, 0.0
      %v2258 = vmax.f32 %v1890, 0.0
      %v2259 = vmax.f32 %v2191, 0.0
      %v2260 = vmax.f32 %v2193, 0.0
      %v2261 = vmax.f32 %v1894, 0.0
      %v2262 = vmax.f32 %v1896, 0.0
      %v2263 = vmax.f32 %v2197, 0.0
      %v2264 = vmax.f32 %v2199, 0.0
      %v2265 = vmax.f32 %v1898, 0.0
      %v2266 = vmax.f32 %v1900, 0.0
      %v2267 = vmax.f32 %v2201, 0.0
      %v2268 = vmax.f32 %v2203, 0.0
      %v2269 = vmax.f32 %v1904, 0.0
      %v2270 = vmax.f32 %v1906, 0.0
      %v2271 = vmax.f32 %v2207, 0.0
      %v2272 = vmax.f32 %v2209, 0.0
      %v2273 = vmax.f32 %v1908, 0.0
      %v2274 = vmax.f32 %v1910, 0.0
      %v2275 = vmax.f32 %v2211, 0.0
      %v2276 = vmax.f32 %v2213, 0.0
      %v2277 = vmax.f32 %v1914, 0.0
      %v2278 = vmax.f32 %v1916, 0.0
      %v2279 = vmax.f32 %v2217, 0.0
      %v2280 = vmax.f32 %v2219, 0.0
      %v2281 = vmax.f32 %v1918, 0.0
      %v2282 = vmax.f32 %v1920, 0.0
      %v2283 = vmax.f32 %v2221, 0.0
      %v2284 = vmax.f32 %v2223, 0.0
      %v2285 = vmax.f32 %v1924, 0.0
      %v2286 = vmax.f32 %v1926, 0.0
      %v2287 = vmax.f32 %v2227, 0.0
      %v2288 = vmax.f32 %v2229, 0.0
      %v2289 = vmax.f32 %v1928, 0.0
      %v2290 = vmax.f32 %v1930, 0.0
      %v2291 = vmax.f32 %v2231, 0.0
      %v2292 = vmax.f32 %v2233, 0.0
      %v2293 = vmax.f32 %v1934, 0.0
      %v2294 = vmax.f32 %v1936, 0.0
      %v2295 = vmax.f32 %v2237, 0.0
      %v2296 = vmax.f32 %v2239, 0.0
      %v2297 = vmax.f32 %v1938, 0.0
      %v2298 = vmax.f32 %v1940, 0.0
      %v2299 = vmax.f32 %v2241, 0.0
      %v2300 = vmax.f32 %v2243, 0.0
      %v2301 = vmax.f32 %v1944, 0.0
      %v2302 = vmax.f32 %v1946, 0.0
      %v2303 = vmax.f32 %v2247, 0.0
      %v2304 = vmax.f32 %v2249, 0.0
      %v2305 = vpack.c.bf16 %v2257, %v2253
      %v2306 = vpack.c.bf16 %v2258, %v2254
      %v2307 = vpack.c.bf16 %v2259, %v2255
      %v2308 = vpack.c.bf16 %v2260, %v2256
      %v2309 = vpack.c.bf16 %v2265, %v2261
      %v2310 = vpack.c.bf16 %v2266, %v2262
      %v2311 = vpack.c.bf16 %v2267, %v2263
      %v2312 = vpack.c.bf16 %v2268, %v2264
      %v2313 = vpack.c.bf16 %v2273, %v2269
      %v2314 = vpack.c.bf16 %v2274, %v2270
      %v2315 = vpack.c.bf16 %v2275, %v2271
      %v2316 = vpack.c.bf16 %v2276, %v2272
      %v2317 = vpack.c.bf16 %v2281, %v2277
      %v2318 = vpack.c.bf16 %v2282, %v2278
      %v2319 = vpack.c.bf16 %v2283, %v2279
      %v2320 = vpack.c.bf16 %v2284, %v2280
      %v2321 = vpack.c.bf16 %v2289, %v2285
      %v2322 = vpack.c.bf16 %v2290, %v2286
      %v2323 = vpack.c.bf16 %v2291, %v2287
      %v2324 = vpack.c.bf16 %v2292, %v2288
      %v2325 = vpack.c.bf16 %v2297, %v2293
      %v2326 = vpack.c.bf16 %v2298, %v2294
      %v2327 = vpack.c.bf16 %v2299, %v2295
      %v2328 = vpack.c.bf16 %v2300, %v2296
      %v2329 = vpack.c.bf16 %v2301, %v2301
      %v2330 = vpack.c.bf16 %v2302, %v2302
      %v2331 = vpack.c.bf16 %v2303, %v2303
      %v2332 = vpack.c.bf16 %v2304, %v2304
      %v2333 = vld [vmem:[%s3] sm:$0xff]
      %v2334 = vld [vmem:[%s3 + $0x8] sm:$0xff]
      %v2335 = vld [vmem:[%s3 + $0x10] sm:$0xff]
      %v2336 = vld [vmem:[%s3 + $0x18] sm:$0xff]
      %v2337 = vld [vmem:[%s3 + $0x20] sm:$0xff]
      %v2338 = vld [vmem:[%s3 + $0x28] sm:$0xff]
      %v2339 = vld [vmem:[%s3 + $0x30] sm:$0xff]
      %v2340 = vld [vmem:[%s3 + $0x38] sm:$0xff]
      %v2341 = vld [vmem:[%s3 + $0x40] sm:$0xff]
      %v2342 = vld [vmem:[%s3 + $0x48] sm:$0xff]
      %v2343 = vld [vmem:[%s3 + $0x50] sm:$0xff]
      %v2344 = vld [vmem:[%s3 + $0x58] sm:$0xff]
      %v2345 = vld [vmem:[%s3 + $0x60] sm:$0xff]
      %v2346 = vld [vmem:[%s3 + $0x68] sm:$0xff]
      %v2347 = vld [vmem:[%s3 + $0x70] sm:$0xff]
      %v2348 = vld [vmem:[%s3 + $0x78] sm:$0xff]
      %v2349 = vld [vmem:[%s3 + $0x80] sm:$0xff]
      %v2350 = vld [vmem:[%s3 + $0x88] sm:$0xff]
      %v2351 = vld [vmem:[%s3 + $0x90] sm:$0xff]
      %v2352 = vld [vmem:[%s3 + $0x98] sm:$0xff]
      %v2353 = vld [vmem:[%s3 + $0xa0] sm:$0xff]
      %v2354 = vld [vmem:[%s3 + $0xa8] sm:$0xff]
      %v2355 = vld [vmem:[%s3 + $0xb0] sm:$0xff]
      %v2356 = vld [vmem:[%s3 + $0xb8] sm:$0xff]
      %v2357 = vld [vmem:[%s3 + $0xc0] sm:$0xff]
      %v2358 = vld [vmem:[%s3 + $0xc8] sm:$0xff]
      %v2359 = vld [vmem:[%s3 + $0xd0] sm:$0xff]
      %v2360 = vld [vmem:[%s3 + $0xd8] sm:$0xff]
      %v2361 = vld [vmem:[%s3 + $0xe0] sm:$0xff]
      %v2362 = vld [vmem:[%s3 + $0xe8] sm:$0xff]
      %v2363 = vld [vmem:[%s3 + $0xf0] sm:$0xff]
      %v2364 = vld [vmem:[%s3 + $0xf8] sm:$0xff]
      %v2365 = vld [vmem:[%s3 + $0x100] sm:$0xff]
      %v2366 = vld [vmem:[%s3 + $0x108] sm:$0xff]
      %v2367 = vld [vmem:[%s3 + $0x110] sm:$0xff]
      %v2368 = vld [vmem:[%s3 + $0x118] sm:$0xff]
      %v2369 = vld [vmem:[%s3 + $0x120] sm:$0xff]
      %v2370 = vld [vmem:[%s3 + $0x128] sm:$0xff]
      %v2371 = vld [vmem:[%s3 + $0x130] sm:$0xff]
      %v2372 = vld [vmem:[%s3 + $0x138] sm:$0xff]
      %v2373 = vld [vmem:[%s3 + $0x140] sm:$0xff]
      %v2374 = vld [vmem:[%s3 + $0x148] sm:$0xff]
      %v2375 = vld [vmem:[%s3 + $0x150] sm:$0xff]
      %v2376 = vld [vmem:[%s3 + $0x158] sm:$0xff]
      %v2377 = vld [vmem:[%s3 + $0x160] sm:$0xff]
      %v2378 = vld [vmem:[%s3 + $0x168] sm:$0xff]
      %v2379 = vld [vmem:[%s3 + $0x170] sm:$0xff]
      %v2380 = vld [vmem:[%s3 + $0x178] sm:$0xff]
      %v2381 = vld [vmem:[%s3 + $0x180] sm:$0xff]
      %v2382 = vld [vmem:[%s3 + $0x188] sm:$0xff]
      %v2383 = vld [vmem:[%s3 + $0x190] sm:$0xff]
      %v2384 = vld [vmem:[%s3 + $0x198] sm:$0xff]
      %v2385 = vld [vmem:[%s3 + $0x1a0] sm:$0xff]
      %v2386 = vld [vmem:[%s3 + $0x1a8] sm:$0xff]
      %v2387 = vld [vmem:[%s3 + $0x1b0] sm:$0xff]
      %v2388 = vld [vmem:[%s3 + $0x1b8] sm:$0xff]
      %v2389 = vld [vmem:[%s3 + $0x1c0] sm:$0xff]
      %v2390 = vld [vmem:[%s3 + $0x1c8] sm:$0xff]
      %v2391 = vld [vmem:[%s3 + $0x1d0] sm:$0xff]
      %v2392 = vld [vmem:[%s3 + $0x1d8] sm:$0xff]
      %v2393 = vld [vmem:[%s3 + $0x1e0] sm:$0xff]
      %v2394 = vld [vmem:[%s3 + $0x1e8] sm:$0xff]
      %v2395 = vld [vmem:[%s3 + $0x1f0] sm:$0xff]
      %v2396 = vld [vmem:[%s3 + $0x1f8] sm:$0xff]
      %v2397 = vld [vmem:[%s4] sm:$0x3]
      %v2399 = vlaneseq
      %v2400 = vshrl.u32 %v2399, 7
      %v2401 = vsub.s32 0, %v2400
      %v2402 = vrot.slane %v2397, %v2401
      %v2403 = vlaneseq
      %v2404 = vshrl.u32 %v2403, 7
      %v2405 = vsub.s32 1, %v2404
      %v2406 = vrot.slane %v2397, %v2405
      %v2473 = vunpack.c.l.b16 %v2333
      %v2474 = vunpack.c.h.b16 %v2333
      %v2475 = vunpack.c.l.b16 %v2334
      %v2476 = vunpack.c.h.b16 %v2334
      %v2477 = vunpack.c.l.b16 %v2335
      %v2478 = vunpack.c.h.b16 %v2335
      %v2479 = vunpack.c.l.b16 %v2336
      %v2480 = vunpack.c.h.b16 %v2336
      %v2481 = vunpack.c.l.b16 %v2337
      %v2482 = vunpack.c.h.b16 %v2337
      %v2483 = vunpack.c.l.b16 %v2338
      %v2484 = vunpack.c.h.b16 %v2338
      %v2485 = vunpack.c.l.b16 %v2339
      %v2486 = vunpack.c.h.b16 %v2339
      %v2487 = vunpack.c.l.b16 %v2340
      %v2488 = vunpack.c.h.b16 %v2340
      %v2489 = vunpack.c.l.b16 %v2341
      %v2490 = vunpack.c.h.b16 %v2341
      %v2491 = vunpack.c.l.b16 %v2342
      %v2492 = vunpack.c.h.b16 %v2342
      %v2493 = vunpack.c.l.b16 %v2343
      %v2494 = vunpack.c.h.b16 %v2343
      %v2495 = vunpack.c.l.b16 %v2344
      %v2496 = vunpack.c.h.b16 %v2344
      %v2497 = vunpack.c.l.b16 %v2345
      %v2498 = vunpack.c.h.b16 %v2345
      %v2499 = vunpack.c.l.b16 %v2346
      %v2500 = vunpack.c.h.b16 %v2346
      %v2501 = vunpack.c.l.b16 %v2347
      %v2502 = vunpack.c.h.b16 %v2347
      %v2503 = vunpack.c.l.b16 %v2348
      %v2504 = vunpack.c.h.b16 %v2348
      %v2505 = vunpack.c.l.b16 %v2349
      %v2506 = vunpack.c.h.b16 %v2349
      %v2507 = vunpack.c.l.b16 %v2350
      %v2508 = vunpack.c.h.b16 %v2350
      %v2509 = vunpack.c.l.b16 %v2351
      %v2510 = vunpack.c.h.b16 %v2351
      %v2511 = vunpack.c.l.b16 %v2352
      %v2512 = vunpack.c.h.b16 %v2352
      %v2513 = vunpack.c.l.b16 %v2353
      %v2514 = vunpack.c.h.b16 %v2353
      %v2515 = vunpack.c.l.b16 %v2354
      %v2516 = vunpack.c.h.b16 %v2354
      %v2517 = vunpack.c.l.b16 %v2355
      %v2518 = vunpack.c.h.b16 %v2355
      %v2519 = vunpack.c.l.b16 %v2356
      %v2520 = vunpack.c.h.b16 %v2356
      %v2521 = vunpack.c.l.b16 %v2357
      %v2522 = vunpack.c.h.b16 %v2357
      %v2523 = vunpack.c.l.b16 %v2358
      %v2524 = vunpack.c.h.b16 %v2358
      %v2525 = vunpack.c.l.b16 %v2359
      %v2526 = vunpack.c.h.b16 %v2359
      %v2527 = vunpack.c.l.b16 %v2360
      %v2528 = vunpack.c.h.b16 %v2360
      %v2529 = vunpack.c.l.b16 %v2361
      %v2530 = vunpack.c.h.b16 %v2361
      %v2531 = vunpack.c.l.b16 %v2362
      %v2532 = vunpack.c.h.b16 %v2362
      %v2533 = vunpack.c.l.b16 %v2363
      %v2534 = vunpack.c.h.b16 %v2363
      %v2535 = vunpack.c.l.b16 %v2364
      %v2536 = vunpack.c.h.b16 %v2364
      %v2537 = vunpack.c.l.b16 %v2365
      %v2538 = vunpack.c.h.b16 %v2365
      %v2539 = vunpack.c.l.b16 %v2366
      %v2540 = vunpack.c.h.b16 %v2366
      %v2541 = vunpack.c.l.b16 %v2367
      %v2542 = vunpack.c.h.b16 %v2367
      %v2543 = vunpack.c.l.b16 %v2368
      %v2544 = vunpack.c.h.b16 %v2368
      %v2545 = vunpack.c.l.b16 %v2369
      %v2546 = vunpack.c.h.b16 %v2369
      %v2547 = vunpack.c.l.b16 %v2370
      %v2548 = vunpack.c.h.b16 %v2370
      %v2549 = vunpack.c.l.b16 %v2371
      %v2550 = vunpack.c.h.b16 %v2371
      %v2551 = vunpack.c.l.b16 %v2372
      %v2552 = vunpack.c.h.b16 %v2372
      %v2553 = vunpack.c.l.b16 %v2373
      %v2554 = vunpack.c.h.b16 %v2373
      %v2555 = vunpack.c.l.b16 %v2374
      %v2556 = vunpack.c.h.b16 %v2374
      %v2557 = vunpack.c.l.b16 %v2375
      %v2558 = vunpack.c.h.b16 %v2375
      %v2559 = vunpack.c.l.b16 %v2376
      %v2560 = vunpack.c.h.b16 %v2376
      %v2561 = vunpack.c.l.b16 %v2377
      %v2562 = vunpack.c.h.b16 %v2377
      %v2563 = vunpack.c.l.b16 %v2378
      %v2564 = vunpack.c.h.b16 %v2378
      %v2565 = vunpack.c.l.b16 %v2379
      %v2566 = vunpack.c.h.b16 %v2379
      %v2567 = vunpack.c.l.b16 %v2380
      %v2568 = vunpack.c.h.b16 %v2380
      %v2569 = vunpack.c.l.b16 %v2381
      %v2570 = vunpack.c.h.b16 %v2381
      %v2571 = vunpack.c.l.b16 %v2382
      %v2572 = vunpack.c.h.b16 %v2382
      %v2573 = vunpack.c.l.b16 %v2383
      %v2574 = vunpack.c.h.b16 %v2383
      %v2575 = vunpack.c.l.b16 %v2384
      %v2576 = vunpack.c.h.b16 %v2384
      %v2577 = vunpack.c.l.b16 %v2385
      %v2578 = vunpack.c.h.b16 %v2385
      %v2579 = vunpack.c.l.b16 %v2386
      %v2580 = vunpack.c.h.b16 %v2386
      %v2581 = vunpack.c.l.b16 %v2387
      %v2582 = vunpack.c.h.b16 %v2387
      %v2583 = vunpack.c.l.b16 %v2388
      %v2584 = vunpack.c.h.b16 %v2388
      %v2585 = vunpack.c.l.b16 %v2389
      %v2586 = vunpack.c.h.b16 %v2389
      %v2587 = vunpack.c.l.b16 %v2390
      %v2588 = vunpack.c.h.b16 %v2390
      %v2589 = vunpack.c.l.b16 %v2391
      %v2590 = vunpack.c.h.b16 %v2391
      %v2591 = vunpack.c.l.b16 %v2392
      %v2592 = vunpack.c.h.b16 %v2392
      %v2593 = vunpack.c.l.b16 %v2393
      %v2594 = vunpack.c.h.b16 %v2393
      %v2595 = vunpack.c.l.b16 %v2394
      %v2596 = vunpack.c.h.b16 %v2394
      %v2597 = vunpack.c.l.b16 %v2395
      %v2598 = vunpack.c.h.b16 %v2395
      %v2599 = vunpack.c.l.b16 %v2396
      %v2600 = vunpack.c.h.b16 %v2396
      %v2601 = vpack.c.b16 %v2475, %v2473
      %v2602 = vpack.c.b16 %v2476, %v2474
      %v2603 = vpack.c.b16 %v2479, %v2477
      %v2604 = vpack.c.b16 %v2480, %v2478
      %v2605 = vpack.c.b16 %v2483, %v2481
      %v2606 = vpack.c.b16 %v2484, %v2482
      %v2607 = vpack.c.b16 %v2487, %v2485
      %v2608 = vpack.c.b16 %v2488, %v2486
      %v2609 = vpack.c.b16 %v2491, %v2489
      %v2610 = vpack.c.b16 %v2492, %v2490
      %v2611 = vpack.c.b16 %v2495, %v2493
      %v2612 = vpack.c.b16 %v2496, %v2494
      %v2613 = vpack.c.b16 %v2499, %v2497
      %v2614 = vpack.c.b16 %v2500, %v2498
      %v2615 = vpack.c.b16 %v2503, %v2501
      %v2616 = vpack.c.b16 %v2504, %v2502
      %v2617 = vpack.c.b16 %v2507, %v2505
      %v2618 = vpack.c.b16 %v2508, %v2506
      %v2619 = vpack.c.b16 %v2511, %v2509
      %v2620 = vpack.c.b16 %v2512, %v2510
      %v2621 = vpack.c.b16 %v2515, %v2513
      %v2622 = vpack.c.b16 %v2516, %v2514
      %v2623 = vpack.c.b16 %v2519, %v2517
      %v2624 = vpack.c.b16 %v2520, %v2518
      %v2625 = vpack.c.b16 %v2523, %v2521
      %v2626 = vpack.c.b16 %v2524, %v2522
      %v2627 = vpack.c.b16 %v2527, %v2525
      %v2628 = vpack.c.b16 %v2528, %v2526
      %v2629 = vpack.c.b16 %v2531, %v2529
      %v2630 = vpack.c.b16 %v2532, %v2530
      %v2631 = vpack.c.b16 %v2535, %v2533
      %v2632 = vpack.c.b16 %v2536, %v2534
      %v2633 = vpack.c.b16 %v2539, %v2537
      %v2634 = vpack.c.b16 %v2540, %v2538
      %v2635 = vpack.c.b16 %v2543, %v2541
      %v2636 = vpack.c.b16 %v2544, %v2542
      %v2637 = vpack.c.b16 %v2547, %v2545
      %v2638 = vpack.c.b16 %v2548, %v2546
      %v2639 = vpack.c.b16 %v2551, %v2549
      %v2640 = vpack.c.b16 %v2552, %v2550
      %v2641 = vpack.c.b16 %v2555, %v2553
      %v2642 = vpack.c.b16 %v2556, %v2554
      %v2643 = vpack.c.b16 %v2559, %v2557
      %v2644 = vpack.c.b16 %v2560, %v2558
      %v2645 = vpack.c.b16 %v2563, %v2561
      %v2646 = vpack.c.b16 %v2564, %v2562
      %v2647 = vpack.c.b16 %v2567, %v2565
      %v2648 = vpack.c.b16 %v2568, %v2566
      %v2649 = vpack.c.b16 %v2571, %v2569
      %v2650 = vpack.c.b16 %v2572, %v2570
      %v2651 = vpack.c.b16 %v2575, %v2573
      %v2652 = vpack.c.b16 %v2576, %v2574
      %v2653 = vpack.c.b16 %v2579, %v2577
      %v2654 = vpack.c.b16 %v2580, %v2578
      %v2655 = vpack.c.b16 %v2583, %v2581
      %v2656 = vpack.c.b16 %v2584, %v2582
      %v2657 = vpack.c.b16 %v2587, %v2585
      %v2658 = vpack.c.b16 %v2588, %v2586
      %v2659 = vpack.c.b16 %v2591, %v2589
      %v2660 = vpack.c.b16 %v2592, %v2590
      %v2661 = vpack.c.b16 %v2595, %v2593
      %v2662 = vpack.c.b16 %v2596, %v2594
      %v2663 = vpack.c.b16 %v2599, %v2597
      %v2664 = vpack.c.b16 %v2600, %v2598
      %2729 = vmatprep.subr.bf16.mxu0 %v2616
      %2730 = vmatpush1.bf16.msra.mxu0 %v2615
      %2731 = vmatprep.subr.bf16.mxu0 %v2614
      %2732 = vmatpush1.bf16.msra.mxu0 %v2613
      %2733 = vmatprep.subr.bf16.mxu0 %v2612
      %2734 = vmatpush1.bf16.msra.mxu0 %v2611
      %2735 = vmatprep.subr.bf16.mxu0 %v2610
      %2736 = vmatpush1.bf16.msra.mxu0 %v2609
      %2737 = vmatprep.subr.bf16.mxu0 %v2608
      %2738 = vmatpush1.bf16.msra.mxu0 %v2607
      %2739 = vmatprep.subr.bf16.mxu0 %v2606
      %2740 = vmatpush1.bf16.msra.mxu0 %v2605
      %2741 = vmatprep.subr.bf16.mxu0 %v2604
      %2742 = vmatpush1.bf16.msra.mxu0 %v2603
      %2743 = vmatprep.subr.bf16.mxu0 %v2602
      %2744 = vmatpush1.bf16.msra.mxu0 %v2601
      %2745 = vmatprep.subr.bf16.mxu0 %v2632
      %2746 = vmatpush2.bf16.msra.mxu0 %v2631
      %2747 = vmatprep.subr.bf16.mxu0 %v2630
      %2748 = vmatpush2.bf16.msra.mxu0 %v2629
      %2749 = vmatprep.subr.bf16.mxu0 %v2628
      %2750 = vmatpush2.bf16.msra.mxu0 %v2627
      %2751 = vmatprep.subr.bf16.mxu0 %v2626
      %2752 = vmatpush2.bf16.msra.mxu0 %v2625
      %2753 = vmatprep.subr.bf16.mxu0 %v2624
      %2754 = vmatpush2.bf16.msra.mxu0 %v2623
      %2755 = vmatprep.subr.bf16.mxu0 %v2622
      %2756 = vmatpush2.bf16.msra.mxu0 %v2621
      %2757 = vmatprep.subr.bf16.mxu0 %v2620
      %2758 = vmatpush2.bf16.msra.mxu0 %v2619
      %2759 = vmatprep.subr.bf16.mxu0 %v2618
      %2760 = vmatpush2.bf16.msra.mxu0 %v2617
      %2761 = vmatprep.mubr.bf16.mxu0 %v2306
      %2762 = vmatmul.mubr.bf16.gmra.mxu0 %v2305
      %v2763 = vpop.f32.mrf.mxu0
      %v2764 = vadd.f32 %v2402, %v2763
      %v2765 = vpop.f32.mrf.mxu0
      %v2766 = vadd.f32 %v2406, %v2765
      %v2767 = vpop.f32.mrf.mxu0
      %v2768 = vadd.f32 %v2402, %v2767
      %v2769 = vpop.f32.mrf.mxu0
      %v2770 = vadd.f32 %v2406, %v2769
      %2771 = vmatprep.mubr.bf16.mxu0 %v2310
      %2772 = vmatmul.mubr.bf16.gmra.mxu0 %v2309
      %v2773 = vpop.f32.mrf.mxu0
      %v2774 = vadd.f32 %v2402, %v2773
      %v2775 = vpop.f32.mrf.mxu0
      %v2776 = vadd.f32 %v2406, %v2775
      %v2777 = vpop.f32.mrf.mxu0
      %v2778 = vadd.f32 %v2402, %v2777
      %v2779 = vpop.f32.mrf.mxu0
      %v2780 = vadd.f32 %v2406, %v2779
      %2781 = vmatprep.mubr.bf16.mxu0 %v2314
      %2782 = vmatmul.mubr.bf16.gmra.mxu0 %v2313
      %v2783 = vpop.f32.mrf.mxu0
      %v2784 = vadd.f32 %v2402, %v2783
      %v2785 = vpop.f32.mrf.mxu0
      %v2786 = vadd.f32 %v2406, %v2785
      %v2787 = vpop.f32.mrf.mxu0
      %v2788 = vadd.f32 %v2402, %v2787
      %v2789 = vpop.f32.mrf.mxu0
      %v2790 = vadd.f32 %v2406, %v2789
      %2791 = vmatprep.mubr.bf16.mxu0 %v2318
      %2792 = vmatmul.mubr.bf16.gmra.mxu0 %v2317
      %v2793 = vpop.f32.mrf.mxu0
      %v2794 = vadd.f32 %v2402, %v2793
      %v2795 = vpop.f32.mrf.mxu0
      %v2796 = vadd.f32 %v2406, %v2795
      %v2797 = vpop.f32.mrf.mxu0
      %v2798 = vadd.f32 %v2402, %v2797
      %v2799 = vpop.f32.mrf.mxu0
      %v2800 = vadd.f32 %v2406, %v2799
      %2801 = vmatprep.mubr.bf16.mxu0 %v2322
      %2802 = vmatmul.mubr.bf16.gmra.mxu0 %v2321
      %v2803 = vpop.f32.mrf.mxu0
      %v2804 = vadd.f32 %v2402, %v2803
      %v2805 = vpop.f32.mrf.mxu0
      %v2806 = vadd.f32 %v2406, %v2805
      %v2807 = vpop.f32.mrf.mxu0
      %v2808 = vadd.f32 %v2402, %v2807
      %v2809 = vpop.f32.mrf.mxu0
      %v2810 = vadd.f32 %v2406, %v2809
      %2811 = vmatprep.mubr.bf16.mxu0 %v2326
      %2812 = vmatmul.mubr.bf16.gmra.mxu0 %v2325
      %v2813 = vpop.f32.mrf.mxu0
      %v2814 = vadd.f32 %v2402, %v2813
      %v2815 = vpop.f32.mrf.mxu0
      %v2816 = vadd.f32 %v2406, %v2815
      %v2817 = vpop.f32.mrf.mxu0
      %v2818 = vadd.f32 %v2402, %v2817
      %v2819 = vpop.f32.mrf.mxu0
      %v2820 = vadd.f32 %v2406, %v2819
      %2821 = vmatprep.mubr.bf16.mxu0 %v2330
      %2822 = vmatmul.mubr.bf16.gmra.mxu0 %v2329
      %v2823 = vpop.f32.mrf.mxu0
      %v2824 = vadd.f32 %v2402, %v2823
      %v2825 = vpop.f32.mrf.mxu0
      %v2826 = vadd.f32 %v2406, %v2825
      %v2827 = vpop.f32.mrf.mxu0
      %v2828 = vpop.f32.mrf.mxu0
      %2829 = vdwg.mxu0
      %2830 = vmatprep.subr.bf16.mxu0 %v2648
      %2831 = vmatpush1.bf16.msra.mxu0 %v2647
      %2832 = vmatprep.subr.bf16.mxu0 %v2646
      %2833 = vmatpush1.bf16.msra.mxu0 %v2645
      %2834 = vmatprep.subr.bf16.mxu0 %v2644
      %2835 = vmatpush1.bf16.msra.mxu0 %v2643
      %2836 = vmatprep.subr.bf16.mxu0 %v2642
      %2837 = vmatpush1.bf16.msra.mxu0 %v2641
      %2838 = vmatprep.subr.bf16.mxu0 %v2640
      %2839 = vmatpush1.bf16.msra.mxu0 %v2639
      %2840 = vmatprep.subr.bf16.mxu0 %v2638
      %2841 = vmatpush1.bf16.msra.mxu0 %v2637
      %2842 = vmatprep.subr.bf16.mxu0 %v2636
      %2843 = vmatpush1.bf16.msra.mxu0 %v2635
      %2844 = vmatprep.subr.bf16.mxu0 %v2634
      %2845 = vmatpush1.bf16.msra.mxu0 %v2633
      %2846 = vmatprep.subr.bf16.mxu0 %v2664
      %2847 = vmatpush2.bf16.msra.mxu0 %v2663
      %2848 = vmatprep.subr.bf16.mxu0 %v2662
      %2849 = vmatpush2.bf16.msra.mxu0 %v2661
      %2850 = vmatprep.subr.bf16.mxu0 %v2660
      %2851 = vmatpush2.bf16.msra.mxu0 %v2659
      %2852 = vmatprep.subr.bf16.mxu0 %v2658
      %2853 = vmatpush2.bf16.msra.mxu0 %v2657
      %2854 = vmatprep.subr.bf16.mxu0 %v2656
      %2855 = vmatpush2.bf16.msra.mxu0 %v2655
      %2856 = vmatprep.subr.bf16.mxu0 %v2654
      %2857 = vmatpush2.bf16.msra.mxu0 %v2653
      %2858 = vmatprep.subr.bf16.mxu0 %v2652
      %2859 = vmatpush2.bf16.msra.mxu0 %v2651
      %2860 = vmatprep.subr.bf16.mxu0 %v2650
      %2861 = vmatpush2.bf16.msra.mxu0 %v2649
      %2862 = vmatprep.mubr.bf16.mxu0 %v2308
      %2863 = vmatmul.mubr.bf16.gmra.mxu0 %v2307
      %v2864 = vpop.f32.mrf.mxu0
      %v2865 = vadd.f32 %v2764, %v2864
      %v2866 = vpop.f32.mrf.mxu0
      %v2867 = vadd.f32 %v2766, %v2866
      %v2868 = vpop.f32.mrf.mxu0
      %v2869 = vadd.f32 %v2768, %v2868
      %v2870 = vpop.f32.mrf.mxu0
      %v2871 = vadd.f32 %v2770, %v2870
      %2872 = vmatprep.mubr.bf16.mxu0 %v2312
      %2873 = vmatmul.mubr.bf16.gmra.mxu0 %v2311
      %v2874 = vpop.f32.mrf.mxu0
      %v2875 = vadd.f32 %v2774, %v2874
      %v2876 = vpop.f32.mrf.mxu0
      %v2877 = vadd.f32 %v2776, %v2876
      %v2878 = vpop.f32.mrf.mxu0
      %v2879 = vadd.f32 %v2778, %v2878
      %v2880 = vpop.f32.mrf.mxu0
      %v2881 = vadd.f32 %v2780, %v2880
      %2882 = vmatprep.mubr.bf16.mxu0 %v2316
      %2883 = vmatmul.mubr.bf16.gmra.mxu0 %v2315
      %v2884 = vpop.f32.mrf.mxu0
      %v2885 = vadd.f32 %v2784, %v2884
      %v2886 = vpop.f32.mrf.mxu0
      %v2887 = vadd.f32 %v2786, %v2886
      %v2888 = vpop.f32.mrf.mxu0
      %v2889 = vadd.f32 %v2788, %v2888
      %v2890 = vpop.f32.mrf.mxu0
      %v2891 = vadd.f32 %v2790, %v2890
      %2892 = vmatprep.mubr.bf16.mxu0 %v2320
      %2893 = vmatmul.mubr.bf16.gmra.mxu0 %v2319
      %v2894 = vpop.f32.mrf.mxu0
      %v2895 = vadd.f32 %v2794, %v2894
      %v2896 = vpop.f32.mrf.mxu0
      %v2897 = vadd.f32 %v2796, %v2896
      %v2898 = vpop.f32.mrf.mxu0
      %v2899 = vadd.f32 %v2798, %v2898
      %v2900 = vpop.f32.mrf.mxu0
      %v2901 = vadd.f32 %v2800, %v2900
      %2902 = vmatprep.mubr.bf16.mxu0 %v2324
      %2903 = vmatmul.mubr.bf16.gmra.mxu0 %v2323
      %v2904 = vpop.f32.mrf.mxu0
      %v2905 = vadd.f32 %v2804, %v2904
      %v2906 = vpop.f32.mrf.mxu0
      %v2907 = vadd.f32 %v2806, %v2906
      %v2908 = vpop.f32.mrf.mxu0
      %v2909 = vadd.f32 %v2808, %v2908
      %v2910 = vpop.f32.mrf.mxu0
      %v2911 = vadd.f32 %v2810, %v2910
      %2912 = vmatprep.mubr.bf16.mxu0 %v2328
      %2913 = vmatmul.mubr.bf16.gmra.mxu0 %v2327
      %v2914 = vpop.f32.mrf.mxu0
      %v2915 = vadd.f32 %v2814, %v2914
      %v2916 = vpop.f32.mrf.mxu0
      %v2917 = vadd.f32 %v2816, %v2916
      %v2918 = vpop.f32.mrf.mxu0
      %v2919 = vadd.f32 %v2818, %v2918
      %v2920 = vpop.f32.mrf.mxu0
      %v2921 = vadd.f32 %v2820, %v2920
      %2922 = vmatprep.mubr.bf16.mxu0 %v2332
      %2923 = vmatmul.mubr.bf16.gmra.mxu0 %v2331
      %v2924 = vpop.f32.mrf.mxu0
      %v2925 = vadd.f32 %v2824, %v2924
      %v2926 = vpop.f32.mrf.mxu0
      %v2927 = vadd.f32 %v2826, %v2926
      %v2928 = vpop.f32.mrf.mxu0
      %v2929 = vpop.f32.mrf.mxu0
      %2930 = vdwg.mxu0
      %2931 = vst [vmem:[%s231] sm:$0xff] %v2865
      %2932 = vst [vmem:[%s231 + $0x8] sm:$0xff] %v2867
      %2933 = vst [vmem:[%s231 + $0x10] sm:$0xff] %v2869
      %2934 = vst [vmem:[%s231 + $0x18] sm:$0xff] %v2871
      %2935 = vst [vmem:[%s231 + $0x20] sm:$0xff] %v2875
      %2936 = vst [vmem:[%s231 + $0x28] sm:$0xff] %v2877
      %2937 = vst [vmem:[%s231 + $0x30] sm:$0xff] %v2879
      %2938 = vst [vmem:[%s231 + $0x38] sm:$0xff] %v2881
      %2939 = vst [vmem:[%s231 + $0x40] sm:$0xff] %v2885
      %2940 = vst [vmem:[%s231 + $0x48] sm:$0xff] %v2887
      %2941 = vst [vmem:[%s231 + $0x50] sm:$0xff] %v2889
      %2942 = vst [vmem:[%s231 + $0x58] sm:$0xff] %v2891
      %2943 = vst [vmem:[%s231 + $0x60] sm:$0xff] %v2895
      %2944 = vst [vmem:[%s231 + $0x68] sm:$0xff] %v2897
      %2945 = vst [vmem:[%s231 + $0x70] sm:$0xff] %v2899
      %2946 = vst [vmem:[%s231 + $0x78] sm:$0xff] %v2901
      %2947 = vst [vmem:[%s231 + $0x80] sm:$0xff] %v2905
      %2948 = vst [vmem:[%s231 + $0x88] sm:$0xff] %v2907
      %2949 = vst [vmem:[%s231 + $0x90] sm:$0xff] %v2909
      %2950 = vst [vmem:[%s231 + $0x98] sm:$0xff] %v2911
      %2951 = vst [vmem:[%s231 + $0xa0] sm:$0xff] %v2915
      %2952 = vst [vmem:[%s231 + $0xa8] sm:$0xff] %v2917
      %2953 = vst [vmem:[%s231 + $0xb0] sm:$0xff] %v2919
      %2954 = vst [vmem:[%s231 + $0xb8] sm:$0xff] %v2921
      %2955 = vst [vmem:[%s231 + $0xc0] sm:$0xff] %v2925
      %2956 = vst [vmem:[%s231 + $0xc8] sm:$0xff] %v2927
      %s2957 = smul.u32 13, %s16
      %p2958 = scmp.lt.s32.totalorder %s2957, 25
      %s2959 = scalar_select %p2958, %s2957, 25
      %s2960 = smul.addr %s2959, 2
      %s2961 = smul.addr %s2960, 8
      %s2962 = scalar_lea.vmem %s5, %s2961
      // Predicated region
      $region41: #{embedding_projector.1} parent=39 // pred_check
        %p2963 = pneg %p144
      $region42: #{embedding_projector.1} parent=39 // pred_check_branch
        %2965 = sbr.rel (%p2963) target = $region44
      $region43: #{embedding_projector.1} parent=39 // pred_region
        %s2966 = smul.u32 13, %s16
      $region44: #{embedding_projector.1} parent=39 // pred_fallthru
        _
    $region40: #{embedding_projector.1} parent=5 // pred_fallthru
      _
    %p2967 = scmp.le.s32.totalorder 2, %s11
    // Predicated region
    $region45: #{embedding_projector.1} parent=5 // pred_check
      %p2968 = pneg %p2967
    $region46: #{embedding_projector.1} parent=5 // pred_check_branch
      %2970 = sbr.rel (%p2968) target = $region48
    $region47: #{embedding_projector.1} parent=5 // pred_region
      %s2971 = ssub.s32 %s11, 2
      // Predicated region
      $region49: #{embedding_projector.1} parent=47 // pred_check
        %p2972 = pneg %p150
      $region50: #{embedding_projector.1} parent=47 // pred_check_branch
        %2974 = sbr.rel (%p2972) target = $region52
      $region51: #{embedding_projector.1} parent=47 // pred_region
        %s2975 = smul.u32 13, %s17
        %p2976 = scmp.lt.s32.totalorder %s2975, 25
        %s2977 = scalar_select %p2976, %s2975, 25
        %s2978 = smul.addr %s2977, 2
        %s2979 = smul.addr %s2978, 8
        %s2980 = scalar_lea.vmem %s5, %s2979
      $region52: #{embedding_projector.1} parent=47 // pred_fallthru
        _
    $region48: #{embedding_projector.1} parent=5 // pred_fallthru
      _
  $region6: #{embedding_projector.1} parent=0 // loop_footer
    %s15 = sadd.s32 1, %s11
  $region7: #{embedding_projector.1} parent=0 // loop_footer_branch
    %10 = sbr.rel target = $region3
  $region8: #{embedding_projector.1} parent=0 // loop_exit
    _

</llo_original>
